<compile_context>
chip_gen: v7x
topology: tpu7x:2x2x1
jax: 0.10.0
libtpu: 0.0.40
codegen_flags: <defaults>
</compile_context>

<pallas_src>
import functools

import jax
import jax.numpy as jnp
from jax import lax
from jax.experimental import pallas as pl
from jax.experimental.pallas import tpu as pltpu

# Set to jnp.bfloat16 on v6e/v7x for bf16-native MXU throughput at realistic
# hidden sizes (state + gate nonlinearities stay f32 either way).  Default
# f32 keeps numerical parity with the PyTorch module and is right for v5e.
MATMUL_DTYPE = jnp.float32


# ----------------------------------------------------------------------------
# Fused bidirectional LSTM (optionally with fused fc epilogue)
# ----------------------------------------------------------------------------
def _bilstm_kernel(x_ref, wih_f_ref, whh_f_ref, b_f_ref,
                   wih_b_ref, whh_b_ref, b_b_ref, *rest,
                   seq_len, batch, hidden, with_fc):
    """x_ref is time-major flattened: row index = t*batch + b."""
    if with_fc:
        fcw_ref, fcb_ref, out_ref, gxf_ref, gxb_ref, of_ref, ob_ref = rest
    else:
        out_ref, gxf_ref, gxb_ref, of_ref, ob_ref = rest

    mdt = MATMUL_DTYPE
    x = x_ref[...].astype(mdt)                              # (T*B, Din)

    # Hoisted input projection: one matmul per direction for the whole
    # sequence (bias b_ih+b_hh folded in), instead of T tiny per-step matmuls.
    gxf_ref[...] = jnp.dot(x, wih_f_ref[...].astype(mdt),
                           preferred_element_type=jnp.float32) + b_f_ref[...]
    gxb_ref[...] = jnp.dot(x, wih_b_ref[...].astype(mdt),
                           preferred_element_type=jnp.float32) + b_b_ref[...]

    whh_f = whh_f_ref[...].astype(mdt)
    whh_b = whh_b_ref[...].astype(mdt)

    def cell(gx, h_prev, c_prev, whh):
        gates = gx + jnp.dot(h_prev.astype(mdt), whh,
                             preferred_element_type=jnp.float32)  # (B, 4H)
        # Full-vreg EUP nonlinearities once, then slice (gate order i,f,g,o).
        sig = jax.nn.sigmoid(gates)
        th = jnp.tanh(gates)
        i_g = sig[:, 0 * hidden:1 * hidden]
        f_g = sig[:, 1 * hidden:2 * hidden]
        g_g = th[:, 2 * hidden:3 * hidden]
        o_g = sig[:, 3 * hidden:4 * hidden]
        c_new = f_g * c_prev + i_g * g_g
        h_new = o_g * jnp.tanh(c_new)
        return h_new, c_new

    def step(t, carry):
        h_f, c_f, h_b, c_b = carry
        rf = pl.multiple_of(t * batch, batch)                   # fwd rows
        rb = pl.multiple_of((seq_len - 1 - t) * batch, batch)   # bwd rows
        h_f, c_f = cell(gxf_ref[pl.ds(rf, batch), :], h_f, c_f, whh_f)
        h_b, c_b = cell(gxb_ref[pl.ds(rb, batch), :], h_b, c_b, whh_b)
        of_ref[pl.ds(rf, batch), :] = h_f
        ob_ref[pl.ds(rb, batch), :] = h_b
        return h_f, c_f, h_b, c_b

    z = jnp.zeros((batch, hidden), jnp.float32)
    lax.fori_loop(0, seq_len, step, (z, z, z, z), unroll=True)

    if with_fc:
        # fc epilogue fused here; fc weight is lane-padded to 128 outputs so
        # the final store is lane-dense (no masked vst for the 3 real logits).
        out_ref[...] = (
            jnp.dot(of_ref[...].astype(mdt),
                    fcw_ref[0:hidden, :].astype(mdt),
                    preferred_element_type=jnp.float32)
            + jnp.dot(ob_ref[...].astype(mdt),
                      fcw_ref[hidden:2 * hidden, :].astype(mdt),
                      preferred_element_type=jnp.float32)
            + fcb_ref[...])
    else:
        # fwd in lanes [0:H), bwd in lanes [H:2H) of one output block.
        out_ref[:, 0:hidden] = of_ref[...]
        out_ref[:, hidden:2 * hidden] = ob_ref[...]


def fused_bilstm(x_flat, params, hidden, *, seq_len, batch, fc_w=None, fc_b=None):
    """x_flat: (T*B, D) time-major flattened -> (T*B, 2H) or (T*B, 128) logits."""
    tb, d_in = x_flat.shape
    assert tb == seq_len * batch
    with_fc = fc_w is not None
    h4 = 4 * hidden

    inputs = [x_flat.astype(jnp.float32),
              params["w_ih_f"], params["w_hh_f"], params["b_f"],
              params["w_ih_b"], params["w_hh_b"], params["b_b"]]
    in_specs = [pl.BlockSpec((tb, d_in), lambda i: (0, 0)),
                pl.BlockSpec((d_in, h4), lambda i: (0, 0)),
                pl.BlockSpec((hidden, h4), lambda i: (0, 0)),
                pl.BlockSpec((1, h4), lambda i: (0, 0)),
                pl.BlockSpec((d_in, h4), lambda i: (0, 0)),
                pl.BlockSpec((hidden, h4), lambda i: (0, 0)),
                pl.BlockSpec((1, h4), lambda i: (0, 0))]

    if with_fc:
        c_pad = 128                      # lane-dense output, real classes sliced later
        n_cls = fc_w.shape[1]
        fcw_pad = jnp.zeros((2 * hidden, c_pad), jnp.float32).at[:, :n_cls].set(fc_w)
        fcb_pad = jnp.zeros((1, c_pad), jnp.float32).at[:, :n_cls].set(fc_b)
        inputs += [fcw_pad, fcb_pad]
        in_specs += [pl.BlockSpec((2 * hidden, c_pad), lambda i: (0, 0)),
                     pl.BlockSpec((1, c_pad), lambda i: (0, 0))]
        out_dim = c_pad
    else:
        out_dim = 2 * hidden

    flops = 2 * tb * d_in * h4 * 2 + 2 * tb * hidden * h4 * 2
    fc_bytes = 0
    if with_fc:
        flops += 2 * tb * (2 * hidden) * out_dim
        fc_bytes = 4 * (2 * hidden * out_dim + out_dim)
    cost = pl.CostEstimate(
        flops=flops,
        transcendentals=tb * 2 * (2 * h4 + hidden),
        bytes_accessed=(4 * (tb * d_in + tb * out_dim)
                        + 4 * 2 * (d_in * h4 + hidden * h4 + h4)
                        + fc_bytes))

    kernel = functools.partial(_bilstm_kernel, seq_len=seq_len, batch=batch,
                               hidden=hidden, with_fc=with_fc)
    return pl.pallas_call(
        kernel,
        out_shape=jax.ShapeDtypeStruct((tb, out_dim), jnp.float32),
        grid=(1,),
        in_specs=in_specs,
        out_specs=pl.BlockSpec((tb, out_dim), lambda i: (0, 0)),
        scratch_shapes=[
            pltpu.VMEM((tb, h4), jnp.float32),      # hoisted gates, fwd
            pltpu.VMEM((tb, h4), jnp.float32),      # hoisted gates, bwd
            pltpu.VMEM((tb, hidden), jnp.float32),  # per-step outputs, fwd
            pltpu.VMEM((tb, hidden), jnp.float32),  # per-step outputs, bwd
        ],
        compiler_params=pltpu.CompilerParams(
            dimension_semantics=("arbitrary",)),
        cost_estimate=cost,
    )(*inputs)


# ----------------------------------------------------------------------------
# ConceptTagger forward (eval path, use_crf=False)
# ----------------------------------------------------------------------------
def concept_tagger_forward(word_ids, slot_ids, slot_len, emb_table,
                           lstm1_params, lstm2_params, fc_w, fc_b, H1, H2):
    B, T = word_ids.shape
    # Embedding gathers (glue, plain JAX).
    x = jnp.take(emb_table, word_ids, axis=0)        # (B, T, E)
    slot = jnp.take(emb_table, slot_ids, axis=0)     # (B, Ts, E)

    # Time-major flattened layout (row = t*B + b) used end-to-end; the only
    # wrapper transposes are this tiny one and the final logits reshape.
    x_flat = jnp.transpose(x, (1, 0, 2)).reshape(T * B, -1)

    # BiLSTM 1 (fused fwd+bwd, single kernel).
    # TODO(synk): pack_padded_sequence variable-length masking not modeled;
    # all sequences here are full length, so state never crosses padding.
    h1 = fused_bilstm(x_flat, lstm1_params, H1, seq_len=T, batch=B)  # (T*B, 2H1)

    # Slot-description mean embedding in plain JAX (tiny; XLA fuses it).
    # Relies on emb row 0 (<PAD>) being zero, same as the PyTorch sum/len trick.
    slot_vec = jnp.sum(slot.astype(jnp.float32), axis=1) / slot_len  # (B, E)
    slot_rows = jnp.tile(slot_vec, (T, 1))                           # (T*B, E)
    x2_flat = jnp.concatenate([h1, slot_rows], axis=-1)              # (T*B, 2H1+E)

    # BiLSTM 2 with the fc projection fused as a lane-dense epilogue.
    # TODO(synk): nn.Dropout is identity in eval mode; train-mode dropout and
    # the CRF branch (use_crf=True) are not modeled.
    logits_pad = fused_bilstm(x2_flat, lstm2_params, H2, seq_len=T, batch=B,
                              fc_w=fc_w, fc_b=fc_b)                  # (T*B, 128)

    logits = logits_pad[:, :3].reshape(T, B, 3).transpose(1, 0, 2)   # (B, T, 3)
    return logits


# ----------------------------------------------------------------------------
# Deterministic parameter initialization (shapes from ConceptTagger.__init__)
# ----------------------------------------------------------------------------
def _init_lstm(key, d_in, hidden):
    ks = jax.random.split(key, 6)
    s = float(hidden) ** -0.5

    def u(k, shape):
        return jax.random.uniform(k, shape, jnp.float32, -s, s)

    return {
        "w_ih_f": u(ks[0], (d_in, 4 * hidden)),
        "w_hh_f": u(ks[1], (hidden, 4 * hidden)),
        "b_f":    u(ks[2], (1, 4 * hidden)),   # b_ih + b_hh folded together
        "w_ih_b": u(ks[3], (d_in, 4 * hidden)),
        "w_hh_b": u(ks[4], (hidden, 4 * hidden)),
        "b_b":    u(ks[5], (1, 4 * hidden)),
    }


def init_params(key, vocab, E, H1, H2):
    k_emb, k_l1, k_l2, k_fw, k_fb = jax.random.split(key, 5)
    emb = jax.random.normal(k_emb, (vocab, E), jnp.float32) * 0.1
    emb = emb.at[0].set(0.0)                 # padding_idx = word2Idx['<PAD>'] = 0
    lstm1 = _init_lstm(k_l1, E, H1)
    lstm2 = _init_lstm(k_l2, 2 * H1 + E, H2)
    s = float(2 * H2) ** -0.5
    fc_w = jax.random.uniform(k_fw, (2 * H2, 3), jnp.float32, -s, s)
    fc_b = jax.random.uniform(k_fb, (1, 3), jnp.float32, -s, s)
    return emb, lstm1, lstm2, fc_w, fc_b


# ----------------------------------------------------------------------------
# Pure-JAX reference (same math, straightforward per-step loops)
# ----------------------------------------------------------------------------
def _reference_forward(word_ids, slot_ids, slot_len, emb, l1, l2, fc_w, fc_b,
                       H1, H2):
    hp = jax.lax.Precision.HIGHEST

    def lstm_dir(x_btd, w_ih, w_hh, b, hidden, reverse):
        Bq, Tq, _ = x_btd.shape
        h = jnp.zeros((Bq, hidden), jnp.float32)
        c = jnp.zeros((Bq, hidden), jnp.float32)
        outs = [None] * Tq
        order = range(Tq - 1, -1, -1) if reverse else range(Tq)
        for t in order:
            g = (jnp.dot(x_btd[:, t, :], w_ih, precision=hp)
                 + jnp.dot(h, w_hh, precision=hp) + b)
            i = jax.nn.sigmoid(g[:, :hidden])
            f = jax.nn.sigmoid(g[:, hidden:2 * hidden])
            gg = jnp.tanh(g[:, 2 * hidden:3 * hidden])
            o = jax.nn.sigmoid(g[:, 3 * hidden:4 * hidden])
            c = f * c + i * gg
            h = o * jnp.tanh(c)
            outs[t] = h
        return jnp.stack(outs, axis=1)           # (B, T, H)

    def bilstm(x_btd, p, hidden):
        fwd = lstm_dir(x_btd, p["w_ih_f"], p["w_hh_f"], p["b_f"], hidden, False)
        bwd = lstm_dir(x_btd, p["w_ih_b"], p["w_hh_b"], p["b_b"], hidden, True)
        return jnp.concatenate([fwd, bwd], axis=-1)

    x = jnp.take(emb, word_ids, axis=0)
    slot = jnp.take(emb, slot_ids, axis=0)
    h1 = bilstm(x, l1, H1)
    slot_vec = jnp.sum(slot, axis=1) / slot_len
    Bq, Tq, _ = h1.shape
    slot_b = jnp.broadcast_to(slot_vec[:, None, :], (Bq, Tq, slot_vec.shape[-1]))
    h2 = bilstm(jnp.concatenate([h1, slot_b], axis=-1), l2, H2)
    return jnp.dot(h2, fc_w, precision=hp) + fc_b


if __name__ == "__main__":
    key = jax.random.PRNGKey(0)
    B, T, Ts = 2, 8, 4           # batch, sentence length, slot-description length
    E, H1, H2 = 32, 32, 32       # embed_size, hidden_size1, hidden_size2
    vocab = 64

    k_p, k_w, k_s = jax.random.split(key, 3)
    emb, lstm1_p, lstm2_p, fc_w, fc_b = init_params(k_p, vocab, E, H1, H2)

    # Synthetic token ids (>=1 so nothing hits <PAD>=0); all lengths == T/Ts.
    word_ids = jax.random.randint(k_w, (B, T), 1, vocab, dtype=jnp.int32)
    slot_ids = jax.random.randint(k_s, (B, Ts), 1, vocab, dtype=jnp.int32)
    slot_len = jnp.full((B, 1), float(Ts), dtype=jnp.float32)

    logits = concept_tagger_forward(word_ids, slot_ids, slot_len, emb,
                                    lstm1_p, lstm2_p, fc_w, fc_b, H1, H2)
    preds = jnp.argmax(logits, axis=-1)          # eval path (use_crf=False)
    jax.block_until_ready((logits, preds))

    ref = _reference_forward(word_ids, slot_ids, slot_len, emb,
                             lstm1_p, lstm2_p, fc_w, fc_b, H1, H2)
    assert logits.shape == (B, T, 3) and preds.shape == (B, T)
    assert bool(jnp.allclose(logits, ref, atol=1e-2, rtol=1e-2))
    print("KERNEL_OK")
</pallas_src>

<mosaic_0001>
module attributes {stable_mosaic.version = 11 : i64} {
  func.func @_bilstm_kernel(%arg0: i32, %arg1: memref<16x32xf32, #tpu.memory_space<vmem>>, %arg2: memref<32x128xf32, #tpu.memory_space<vmem>>, %arg3: memref<32x128xf32, #tpu.memory_space<vmem>>, %arg4: memref<1x128xf32, #tpu.memory_space<vmem>>, %arg5: memref<32x128xf32, #tpu.memory_space<vmem>>, %arg6: memref<32x128xf32, #tpu.memory_space<vmem>>, %arg7: memref<1x128xf32, #tpu.memory_space<vmem>>, %arg8: memref<16x64xf32, #tpu.memory_space<vmem>>, %arg9: memref<16x128xf32, #tpu.memory_space<vmem>>, %arg10: memref<16x128xf32, #tpu.memory_space<vmem>>, %arg11: memref<16x32xf32, #tpu.memory_space<vmem>>, %arg12: memref<16x32xf32, #tpu.memory_space<vmem>>) attributes {dimension_semantics = [#tpu.dimension_semantics<arbitrary>], iteration_bounds = array<i64: 1>, scalar_prefetch = 0 : i64, scratch_operands = 4 : i64, tpu.core_type = #tpu.core_type<tc>, window_params = [{pipeline_mode = #tpu.pipeline_mode<synchronous>, transform_indices = @transform_0, window_bounds = array<i64: 16, 32>}, {pipeline_mode = #tpu.pipeline_mode<synchronous>, transform_indices = @transform_1, window_bounds = array<i64: 32, 128>}, {pipeline_mode = #tpu.pipeline_mode<synchronous>, transform_indices = @transform_2, window_bounds = array<i64: 32, 128>}, {pipeline_mode = #tpu.pipeline_mode<synchronous>, transform_indices = @transform_3, window_bounds = array<i64: 1, 128>}, {pipeline_mode = #tpu.pipeline_mode<synchronous>, transform_indices = @transform_4, window_bounds = array<i64: 32, 128>}, {pipeline_mode = #tpu.pipeline_mode<synchronous>, transform_indices = @transform_5, window_bounds = array<i64: 32, 128>}, {pipeline_mode = #tpu.pipeline_mode<synchronous>, transform_indices = @transform_6, window_bounds = array<i64: 1, 128>}, {pipeline_mode = #tpu.pipeline_mode<synchronous>, transform_indices = @transform_7, window_bounds = array<i64: 16, 64>}]} {
    %c0 = arith.constant 0 : index
    %c0_0 = arith.constant 0 : index
    %0 = vector.load %arg1[%c0, %c0_0] : memref<16x32xf32, #tpu.memory_space<vmem>>, vector<16x32xf32>
    %c0_1 = arith.constant 0 : index
    %c0_2 = arith.constant 0 : index
    %1 = vector.load %arg2[%c0_1, %c0_2] : memref<32x128xf32, #tpu.memory_space<vmem>>, vector<32x128xf32>
    %cst = arith.constant dense<0.000000e+00> : vector<16x128xf32>
    %2 = tpu.matmul %0, %1, %cst {dimension_numbers = #tpu.dot_dimension_numbers<[1], [0], [0], [1], [0, 0, 1, 1], [], []>} : vector<16x32xf32>, vector<32x128xf32>, vector<16x128xf32> -> vector<16x128xf32>
    %c0_3 = arith.constant 0 : index
    %c0_4 = arith.constant 0 : index
    %3 = vector.load %arg4[%c0_3, %c0_4] : memref<1x128xf32, #tpu.memory_space<vmem>>, vector<1x128xf32>
    %4 = vector.broadcast %3 : vector<1x128xf32> to vector<16x128xf32>
    %5 = arith.addf %2, %4 : vector<16x128xf32>
    %c0_5 = arith.constant 0 : index
    %c0_6 = arith.constant 0 : index
    %6 = vector.load %arg9[%c0_5, %c0_6] : memref<16x128xf32, #tpu.memory_space<vmem>>, vector<16x128xf32>
    tpu.vector_store %arg9[%c0_5, %c0_6], %5 {strides = array<i32>} : memref<16x128xf32, #tpu.memory_space<vmem>>, vector<16x128xf32>,
    %c0_7 = arith.constant 0 : index
    %c0_8 = arith.constant 0 : index
    %7 = vector.load %arg5[%c0_7, %c0_8] : memref<32x128xf32, #tpu.memory_space<vmem>>, vector<32x128xf32>
    %cst_9 = arith.constant dense<0.000000e+00> : vector<16x128xf32>
    %8 = tpu.matmul %0, %7, %cst_9 {dimension_numbers = #tpu.dot_dimension_numbers<[1], [0], [0], [1], [0, 0, 1, 1], [], []>} : vector<16x32xf32>, vector<32x128xf32>, vector<16x128xf32> -> vector<16x128xf32>
    %c0_10 = arith.constant 0 : index
    %c0_11 = arith.constant 0 : index
    %9 = vector.load %arg7[%c0_10, %c0_11] : memref<1x128xf32, #tpu.memory_space<vmem>>, vector<1x128xf32>
    %10 = vector.broadcast %9 : vector<1x128xf32> to vector<16x128xf32>
    %11 = arith.addf %8, %10 : vector<16x128xf32>
    %c0_12 = arith.constant 0 : index
    %c0_13 = arith.constant 0 : index
    %12 = vector.load %arg10[%c0_12, %c0_13] : memref<16x128xf32, #tpu.memory_space<vmem>>, vector<16x128xf32>
    tpu.vector_store %arg10[%c0_12, %c0_13], %11 {strides = array<i32>} : memref<16x128xf32, #tpu.memory_space<vmem>>, vector<16x128xf32>,
    %c0_14 = arith.constant 0 : index
    %c0_15 = arith.constant 0 : index
    %13 = vector.load %arg3[%c0_14, %c0_15] : memref<32x128xf32, #tpu.memory_space<vmem>>, vector<32x128xf32>
    %c0_16 = arith.constant 0 : index
    %c0_17 = arith.constant 0 : index
    %14 = vector.load %arg6[%c0_16, %c0_17] : memref<32x128xf32, #tpu.memory_space<vmem>>, vector<32x128xf32>
    %cst_18 = arith.constant 0.000000e+00 : f32
    %15 = vector.broadcast %cst_18 : f32 to vector<2x32xf32>
    %c0_i32 = arith.constant 0 : i32
    %c2_i32 = arith.constant 2 : i32
    %16 = arith.muli %c0_i32, %c2_i32 : i32
    %17 = tpu.assume_multiple %16, 2 : i32
    %c7_i32 = arith.constant 7 : i32
    %18 = arith.subi %c7_i32, %c0_i32 : i32
    %c2_i32_19 = arith.constant 2 : i32
    %19 = arith.muli %18, %c2_i32_19 : i32
    %20 = tpu.assume_multiple %19, 2 : i32
    %21 = arith.index_cast %17 : i32 to index
    %c0_20 = arith.constant 0 : index
    %22 = vector.load %arg9[%21, %c0_20] : memref<16x128xf32, #tpu.memory_space<vmem>>, vector<2x128xf32>
    %cst_21 = arith.constant dense<0.000000e+00> : vector<2x128xf32>
    %23 = tpu.matmul %15, %13, %cst_21 {dimension_numbers = #tpu.dot_dimension_numbers<[1], [0], [0], [1], [0, 0, 1, 1], [], []>} : vector<2x32xf32>, vector<32x128xf32>, vector<2x128xf32> -> vector<2x128xf32>
    %24 = arith.addf %22, %23 : vector<2x128xf32>
    %25 = arith.negf %24 : vector<2x128xf32>
    %26 = math.exp %25 : vector<2x128xf32>
    %cst_22 = arith.constant 1.000000e+00 : f32
    %27 = vector.broadcast %cst_22 : f32 to vector<2x128xf32>
    %28 = arith.addf %27, %26 : vector<2x128xf32>
    %29 = arith.divf %27, %28 : vector<2x128xf32>
    %30 = math.tanh %24 : vector<2x128xf32>
    %31 = vector.extract_strided_slice %29 {offsets = [0, 0], sizes = [2, 32], strides = [1, 1]} : vector<2x128xf32> to vector<2x32xf32>
    %32 = vector.extract_strided_slice %29 {offsets = [0, 32], sizes = [2, 32], strides = [1, 1]} : vector<2x128xf32> to vector<2x32xf32>
    %33 = vector.extract_strided_slice %30 {offsets = [0, 64], sizes = [2, 32], strides = [1, 1]} : vector<2x128xf32> to vector<2x32xf32>
    %34 = vector.extract_strided_slice %29 {offsets = [0, 96], sizes = [2, 32], strides = [1, 1]} : vector<2x128xf32> to vector<2x32xf32>
    %35 = arith.mulf %32, %15 : vector<2x32xf32>
    %36 = arith.mulf %31, %33 : vector<2x32xf32>
    %37 = arith.addf %35, %36 : vector<2x32xf32>
    %38 = math.tanh %37 : vector<2x32xf32>
    %39 = arith.mulf %34, %38 : vector<2x32xf32>
    %40 = arith.index_cast %20 : i32 to index
    %c0_23 = arith.constant 0 : index
    %41 = vector.load %arg10[%40, %c0_23] : memref<16x128xf32, #tpu.memory_space<vmem>>, vector<2x128xf32>
    %cst_24 = arith.constant dense<0.000000e+00> : vector<2x128xf32>
    %42 = tpu.matmul %15, %14, %cst_24 {dimension_numbers = #tpu.dot_dimension_numbers<[1], [0], [0], [1], [0, 0, 1, 1], [], []>} : vector<2x32xf32>, vector<32x128xf32>, vector<2x128xf32> -> vector<2x128xf32>
    %43 = arith.addf %41, %42 : vector<2x128xf32>
    %44 = arith.negf %43 : vector<2x128xf32>
    %45 = math.exp %44 : vector<2x128xf32>
    %cst_25 = arith.constant 1.000000e+00 : f32
    %46 = vector.broadcast %cst_25 : f32 to vector<2x128xf32>
    %47 = arith.addf %46, %45 : vector<2x128xf32>
    %48 = arith.divf %46, %47 : vector<2x128xf32>
    %49 = math.tanh %43 : vector<2x128xf32>
    %50 = vector.extract_strided_slice %48 {offsets = [0, 0], sizes = [2, 32], strides = [1, 1]} : vector<2x128xf32> to vector<2x32xf32>
    %51 = vector.extract_strided_slice %48 {offsets = [0, 32], sizes = [2, 32], strides = [1, 1]} : vector<2x128xf32> to vector<2x32xf32>
    %52 = vector.extract_strided_slice %49 {offsets = [0, 64], sizes = [2, 32], strides = [1, 1]} : vector<2x128xf32> to vector<2x32xf32>
    %53 = vector.extract_strided_slice %48 {offsets = [0, 96], sizes = [2, 32], strides = [1, 1]} : vector<2x128xf32> to vector<2x32xf32>
    %54 = arith.mulf %51, %15 : vector<2x32xf32>
    %55 = arith.mulf %50, %52 : vector<2x32xf32>
    %56 = arith.addf %54, %55 : vector<2x32xf32>
    %57 = math.tanh %56 : vector<2x32xf32>
    %58 = arith.mulf %53, %57 : vector<2x32xf32>
    %59 = arith.index_cast %17 : i32 to index
    %c0_26 = arith.constant 0 : index
    %60 = vector.load %arg11[%59, %c0_26] : memref<16x32xf32, #tpu.memory_space<vmem>>, vector<2x32xf32>
    tpu.vector_store %arg11[%59, %c0_26], %39 {strides = array<i32>} : memref<16x32xf32, #tpu.memory_space<vmem>>, vector<2x32xf32>,
    %61 = arith.index_cast %20 : i32 to index
    %c0_27 = arith.constant 0 : index
    %62 = vector.load %arg12[%61, %c0_27] : memref<16x32xf32, #tpu.memory_space<vmem>>, vector<2x32xf32>
    tpu.vector_store %arg12[%61, %c0_27], %58 {strides = array<i32>} : memref<16x32xf32, #tpu.memory_space<vmem>>, vector<2x32xf32>,
    %c1_i32 = arith.constant 1 : i32
    %c2_i32_28 = arith.constant 2 : i32
    %63 = arith.muli %c1_i32, %c2_i32_28 : i32
    %64 = tpu.assume_multiple %63, 2 : i32
    %c7_i32_29 = arith.constant 7 : i32
    %65 = arith.subi %c7_i32_29, %c1_i32 : i32
    %c2_i32_30 = arith.constant 2 : i32
    %66 = arith.muli %65, %c2_i32_30 : i32
    %67 = tpu.assume_multiple %66, 2 : i32
    %68 = arith.index_cast %64 : i32 to index
    %c0_31 = arith.constant 0 : index
    %69 = vector.load %arg9[%68, %c0_31] : memref<16x128xf32, #tpu.memory_space<vmem>>, vector<2x128xf32>
    %cst_32 = arith.constant dense<0.000000e+00> : vector<2x128xf32>
    %70 = tpu.matmul %39, %13, %cst_32 {dimension_numbers = #tpu.dot_dimension_numbers<[1], [0], [0], [1], [0, 0, 1, 1], [], []>} : vector<2x32xf32>, vector<32x128xf32>, vector<2x128xf32> -> vector<2x128xf32>
    %71 = arith.addf %69, %70 : vector<2x128xf32>
    %72 = arith.negf %71 : vector<2x128xf32>
    %73 = math.exp %72 : vector<2x128xf32>
    %cst_33 = arith.constant 1.000000e+00 : f32
    %74 = vector.broadcast %cst_33 : f32 to vector<2x128xf32>
    %75 = arith.addf %74, %73 : vector<2x128xf32>
    %76 = arith.divf %74, %75 : vector<2x128xf32>
    %77 = math.tanh %71 : vector<2x128xf32>
    %78 = vector.extract_strided_slice %76 {offsets = [0, 0], sizes = [2, 32], strides = [1, 1]} : vector<2x128xf32> to vector<2x32xf32>
    %79 = vector.extract_strided_slice %76 {offsets = [0, 32], sizes = [2, 32], strides = [1, 1]} : vector<2x128xf32> to vector<2x32xf32>
    %80 = vector.extract_strided_slice %77 {offsets = [0, 64], sizes = [2, 32], strides = [1, 1]} : vector<2x128xf32> to vector<2x32xf32>
    %81 = vector.extract_strided_slice %76 {offsets = [0, 96], sizes = [2, 32], strides = [1, 1]} : vector<2x128xf32> to vector<2x32xf32>
    %82 = arith.mulf %79, %37 : vector<2x32xf32>
    %83 = arith.mulf %78, %80 : vector<2x32xf32>
    %84 = arith.addf %82, %83 : vector<2x32xf32>
    %85 = math.tanh %84 : vector<2x32xf32>
    %86 = arith.mulf %81, %85 : vector<2x32xf32>
    %87 = arith.index_cast %67 : i32 to index
    %c0_34 = arith.constant 0 : index
    %88 = vector.load %arg10[%87, %c0_34] : memref<16x128xf32, #tpu.memory_space<vmem>>, vector<2x128xf32>
    %cst_35 = arith.constant dense<0.000000e+00> : vector<2x128xf32>
    %89 = tpu.matmul %58, %14, %cst_35 {dimension_numbers = #tpu.dot_dimension_numbers<[1], [0], [0], [1], [0, 0, 1, 1], [], []>} : vector<2x32xf32>, vector<32x128xf32>, vector<2x128xf32> -> vector<2x128xf32>
    %90 = arith.addf %88, %89 : vector<2x128xf32>
    %91 = arith.negf %90 : vector<2x128xf32>
    %92 = math.exp %91 : vector<2x128xf32>
    %cst_36 = arith.constant 1.000000e+00 : f32
    %93 = vector.broadcast %cst_36 : f32 to vector<2x128xf32>
    %94 = arith.addf %93, %92 : vector<2x128xf32>
    %95 = arith.divf %93, %94 : vector<2x128xf32>
    %96 = math.tanh %90 : vector<2x128xf32>
    %97 = vector.extract_strided_slice %95 {offsets = [0, 0], sizes = [2, 32], strides = [1, 1]} : vector<2x128xf32> to vector<2x32xf32>
    %98 = vector.extract_strided_slice %95 {offsets = [0, 32], sizes = [2, 32], strides = [1, 1]} : vector<2x128xf32> to vector<2x32xf32>
    %99 = vector.extract_strided_slice %96 {offsets = [0, 64], sizes = [2, 32], strides = [1, 1]} : vector<2x128xf32> to vector<2x32xf32>
    %100 = vector.extract_strided_slice %95 {offsets = [0, 96], sizes = [2, 32], strides = [1, 1]} : vector<2x128xf32> to vector<2x32xf32>
    %101 = arith.mulf %98, %56 : vector<2x32xf32>
    %102 = arith.mulf %97, %99 : vector<2x32xf32>
    %103 = arith.addf %101, %102 : vector<2x32xf32>
    %104 = math.tanh %103 : vector<2x32xf32>
    %105 = arith.mulf %100, %104 : vector<2x32xf32>
    %106 = arith.index_cast %64 : i32 to index
    %c0_37 = arith.constant 0 : index
    %107 = vector.load %arg11[%106, %c0_37] : memref<16x32xf32, #tpu.memory_space<vmem>>, vector<2x32xf32>
    tpu.vector_store %arg11[%106, %c0_37], %86 {strides = array<i32>} : memref<16x32xf32, #tpu.memory_space<vmem>>, vector<2x32xf32>,
    %108 = arith.index_cast %67 : i32 to index
    %c0_38 = arith.constant 0 : index
    %109 = vector.load %arg12[%108, %c0_38] : memref<16x32xf32, #tpu.memory_space<vmem>>, vector<2x32xf32>
    tpu.vector_store %arg12[%108, %c0_38], %105 {strides = array<i32>} : memref<16x32xf32, #tpu.memory_space<vmem>>, vector<2x32xf32>,
    %c2_i32_39 = arith.constant 2 : i32
    %c2_i32_40 = arith.constant 2 : i32
    %110 = arith.muli %c2_i32_39, %c2_i32_40 : i32
    %111 = tpu.assume_multiple %110, 2 : i32
    %c7_i32_41 = arith.constant 7 : i32
    %112 = arith.subi %c7_i32_41, %c2_i32_39 : i32
    %c2_i32_42 = arith.constant 2 : i32
    %113 = arith.muli %112, %c2_i32_42 : i32
    %114 = tpu.assume_multiple %113, 2 : i32
    %115 = arith.index_cast %111 : i32 to index
    %c0_43 = arith.constant 0 : index
    %116 = vector.load %arg9[%115, %c0_43] : memref<16x128xf32, #tpu.memory_space<vmem>>, vector<2x128xf32>
    %cst_44 = arith.constant dense<0.000000e+00> : vector<2x128xf32>
    %117 = tpu.matmul %86, %13, %cst_44 {dimension_numbers = #tpu.dot_dimension_numbers<[1], [0], [0], [1], [0, 0, 1, 1], [], []>} : vector<2x32xf32>, vector<32x128xf32>, vector<2x128xf32> -> vector<2x128xf32>
    %118 = arith.addf %116, %117 : vector<2x128xf32>
    %119 = arith.negf %118 : vector<2x128xf32>
    %120 = math.exp %119 : vector<2x128xf32>
    %cst_45 = arith.constant 1.000000e+00 : f32
    %121 = vector.broadcast %cst_45 : f32 to vector<2x128xf32>
    %122 = arith.addf %121, %120 : vector<2x128xf32>
    %123 = arith.divf %121, %122 : vector<2x128xf32>
    %124 = math.tanh %118 : vector<2x128xf32>
    %125 = vector.extract_strided_slice %123 {offsets = [0, 0], sizes = [2, 32], strides = [1, 1]} : vector<2x128xf32> to vector<2x32xf32>
    %126 = vector.extract_strided_slice %123 {offsets = [0, 32], sizes = [2, 32], strides = [1, 1]} : vector<2x128xf32> to vector<2x32xf32>
    %127 = vector.extract_strided_slice %124 {offsets = [0, 64], sizes = [2, 32], strides = [1, 1]} : vector<2x128xf32> to vector<2x32xf32>
    %128 = vector.extract_strided_slice %123 {offsets = [0, 96], sizes = [2, 32], strides = [1, 1]} : vector<2x128xf32> to vector<2x32xf32>
    %129 = arith.mulf %126, %84 : vector<2x32xf32>
    %130 = arith.mulf %125, %127 : vector<2x32xf32>
    %131 = arith.addf %129, %130 : vector<2x32xf32>
    %132 = math.tanh %131 : vector<2x32xf32>
    %133 = arith.mulf %128, %132 : vector<2x32xf32>
    %134 = arith.index_cast %114 : i32 to index
    %c0_46 = arith.constant 0 : index
    %135 = vector.load %arg10[%134, %c0_46] : memref<16x128xf32, #tpu.memory_space<vmem>>, vector<2x128xf32>
    %cst_47 = arith.constant dense<0.000000e+00> : vector<2x128xf32>
    %136 = tpu.matmul %105, %14, %cst_47 {dimension_numbers = #tpu.dot_dimension_numbers<[1], [0], [0], [1], [0, 0, 1, 1], [], []>} : vector<2x32xf32>, vector<32x128xf32>, vector<2x128xf32> -> vector<2x128xf32>
    %137 = arith.addf %135, %136 : vector<2x128xf32>
    %138 = arith.negf %137 : vector<2x128xf32>
    %139 = math.exp %138 : vector<2x128xf32>
    %cst_48 = arith.constant 1.000000e+00 : f32
    %140 = vector.broadcast %cst_48 : f32 to vector<2x128xf32>
    %141 = arith.addf %140, %139 : vector<2x128xf32>
    %142 = arith.divf %140, %141 : vector<2x128xf32>
    %143 = math.tanh %137 : vector<2x128xf32>
    %144 = vector.extract_strided_slice %142 {offsets = [0, 0], sizes = [2, 32], strides = [1, 1]} : vector<2x128xf32> to vector<2x32xf32>
    %145 = vector.extract_strided_slice %142 {offsets = [0, 32], sizes = [2, 32], strides = [1, 1]} : vector<2x128xf32> to vector<2x32xf32>
    %146 = vector.extract_strided_slice %143 {offsets = [0, 64], sizes = [2, 32], strides = [1, 1]} : vector<2x128xf32> to vector<2x32xf32>
    %147 = vector.extract_strided_slice %142 {offsets = [0, 96], sizes = [2, 32], strides = [1, 1]} : vector<2x128xf32> to vector<2x32xf32>
    %148 = arith.mulf %145, %103 : vector<2x32xf32>
    %149 = arith.mulf %144, %146 : vector<2x32xf32>
    %150 = arith.addf %148, %149 : vector<2x32xf32>
    %151 = math.tanh %150 : vector<2x32xf32>
    %152 = arith.mulf %147, %151 : vector<2x32xf32>
    %153 = arith.index_cast %111 : i32 to index
    %c0_49 = arith.constant 0 : index
    %154 = vector.load %arg11[%153, %c0_49] : memref<16x32xf32, #tpu.memory_space<vmem>>, vector<2x32xf32>
    tpu.vector_store %arg11[%153, %c0_49], %133 {strides = array<i32>} : memref<16x32xf32, #tpu.memory_space<vmem>>, vector<2x32xf32>,
    %155 = arith.index_cast %114 : i32 to index
    %c0_50 = arith.constant 0 : index
    %156 = vector.load %arg12[%155, %c0_50] : memref<16x32xf32, #tpu.memory_space<vmem>>, vector<2x32xf32>
    tpu.vector_store %arg12[%155, %c0_50], %152 {strides = array<i32>} : memref<16x32xf32, #tpu.memory_space<vmem>>, vector<2x32xf32>,
    %c3_i32 = arith.constant 3 : i32
    %c2_i32_51 = arith.constant 2 : i32
    %157 = arith.muli %c3_i32, %c2_i32_51 : i32
    %158 = tpu.assume_multiple %157, 2 : i32
    %c7_i32_52 = arith.constant 7 : i32
    %159 = arith.subi %c7_i32_52, %c3_i32 : i32
    %c2_i32_53 = arith.constant 2 : i32
    %160 = arith.muli %159, %c2_i32_53 : i32
    %161 = tpu.assume_multiple %160, 2 : i32
    %162 = arith.index_cast %158 : i32 to index
    %c0_54 = arith.constant 0 : index
    %163 = vector.load %arg9[%162, %c0_54] : memref<16x128xf32, #tpu.memory_space<vmem>>, vector<2x128xf32>
    %cst_55 = arith.constant dense<0.000000e+00> : vector<2x128xf32>
    %164 = tpu.matmul %133, %13, %cst_55 {dimension_numbers = #tpu.dot_dimension_numbers<[1], [0], [0], [1], [0, 0, 1, 1], [], []>} : vector<2x32xf32>, vector<32x128xf32>, vector<2x128xf32> -> vector<2x128xf32>
    %165 = arith.addf %163, %164 : vector<2x128xf32>
    %166 = arith.negf %165 : vector<2x128xf32>
    %167 = math.exp %166 : vector<2x128xf32>
    %cst_56 = arith.constant 1.000000e+00 : f32
    %168 = vector.broadcast %cst_56 : f32 to vector<2x128xf32>
    %169 = arith.addf %168, %167 : vector<2x128xf32>
    %170 = arith.divf %168, %169 : vector<2x128xf32>
    %171 = math.tanh %165 : vector<2x128xf32>
    %172 = vector.extract_strided_slice %170 {offsets = [0, 0], sizes = [2, 32], strides = [1, 1]} : vector<2x128xf32> to vector<2x32xf32>
    %173 = vector.extract_strided_slice %170 {offsets = [0, 32], sizes = [2, 32], strides = [1, 1]} : vector<2x128xf32> to vector<2x32xf32>
    %174 = vector.extract_strided_slice %171 {offsets = [0, 64], sizes = [2, 32], strides = [1, 1]} : vector<2x128xf32> to vector<2x32xf32>
    %175 = vector.extract_strided_slice %170 {offsets = [0, 96], sizes = [2, 32], strides = [1, 1]} : vector<2x128xf32> to vector<2x32xf32>
    %176 = arith.mulf %173, %131 : vector<2x32xf32>
    %177 = arith.mulf %172, %174 : vector<2x32xf32>
    %178 = arith.addf %176, %177 : vector<2x32xf32>
    %179 = math.tanh %178 : vector<2x32xf32>
    %180 = arith.mulf %175, %179 : vector<2x32xf32>
    %181 = arith.index_cast %161 : i32 to index
    %c0_57 = arith.constant 0 : index
    %182 = vector.load %arg10[%181, %c0_57] : memref<16x128xf32, #tpu.memory_space<vmem>>, vector<2x128xf32>
    %cst_58 = arith.constant dense<0.000000e+00> : vector<2x128xf32>
    %183 = tpu.matmul %152, %14, %cst_58 {dimension_numbers = #tpu.dot_dimension_numbers<[1], [0], [0], [1], [0, 0, 1, 1], [], []>} : vector<2x32xf32>, vector<32x128xf32>, vector<2x128xf32> -> vector<2x128xf32>
    %184 = arith.addf %182, %183 : vector<2x128xf32>
    %185 = arith.negf %184 : vector<2x128xf32>
    %186 = math.exp %185 : vector<2x128xf32>
    %cst_59 = arith.constant 1.000000e+00 : f32
    %187 = vector.broadcast %cst_59 : f32 to vector<2x128xf32>
    %188 = arith.addf %187, %186 : vector<2x128xf32>
    %189 = arith.divf %187, %188 : vector<2x128xf32>
    %190 = math.tanh %184 : vector<2x128xf32>
    %191 = vector.extract_strided_slice %189 {offsets = [0, 0], sizes = [2, 32], strides = [1, 1]} : vector<2x128xf32> to vector<2x32xf32>
    %192 = vector.extract_strided_slice %189 {offsets = [0, 32], sizes = [2, 32], strides = [1, 1]} : vector<2x128xf32> to vector<2x32xf32>
    %193 = vector.extract_strided_slice %190 {offsets = [0, 64], sizes = [2, 32], strides = [1, 1]} : vector<2x128xf32> to vector<2x32xf32>
    %194 = vector.extract_strided_slice %189 {offsets = [0, 96], sizes = [2, 32], strides = [1, 1]} : vector<2x128xf32> to vector<2x32xf32>
    %195 = arith.mulf %192, %150 : vector<2x32xf32>
    %196 = arith.mulf %191, %193 : vector<2x32xf32>
    %197 = arith.addf %195, %196 : vector<2x32xf32>
    %198 = math.tanh %197 : vector<2x32xf32>
    %199 = arith.mulf %194, %198 : vector<2x32xf32>
    %200 = arith.index_cast %158 : i32 to index
    %c0_60 = arith.constant 0 : index
    %201 = vector.load %arg11[%200, %c0_60] : memref<16x32xf32, #tpu.memory_space<vmem>>, vector<2x32xf32>
    tpu.vector_store %arg11[%200, %c0_60], %180 {strides = array<i32>} : memref<16x32xf32, #tpu.memory_space<vmem>>, vector<2x32xf32>,
    %202 = arith.index_cast %161 : i32 to index
    %c0_61 = arith.constant 0 : index
    %203 = vector.load %arg12[%202, %c0_61] : memref<16x32xf32, #tpu.memory_space<vmem>>, vector<2x32xf32>
    tpu.vector_store %arg12[%202, %c0_61], %199 {strides = array<i32>} : memref<16x32xf32, #tpu.memory_space<vmem>>, vector<2x32xf32>,
    %c4_i32 = arith.constant 4 : i32
    %c2_i32_62 = arith.constant 2 : i32
    %204 = arith.muli %c4_i32, %c2_i32_62 : i32
    %205 = tpu.assume_multiple %204, 2 : i32
    %c7_i32_63 = arith.constant 7 : i32
    %206 = arith.subi %c7_i32_63, %c4_i32 : i32
    %c2_i32_64 = arith.constant 2 : i32
    %207 = arith.muli %206, %c2_i32_64 : i32
    %208 = tpu.assume_multiple %207, 2 : i32
    %209 = arith.index_cast %205 : i32 to index
    %c0_65 = arith.constant 0 : index
    %210 = vector.load %arg9[%209, %c0_65] : memref<16x128xf32, #tpu.memory_space<vmem>>, vector<2x128xf32>
    %cst_66 = arith.constant dense<0.000000e+00> : vector<2x128xf32>
    %211 = tpu.matmul %180, %13, %cst_66 {dimension_numbers = #tpu.dot_dimension_numbers<[1], [0], [0], [1], [0, 0, 1, 1], [], []>} : vector<2x32xf32>, vector<32x128xf32>, vector<2x128xf32> -> vector<2x128xf32>
    %212 = arith.addf %210, %211 : vector<2x128xf32>
    %213 = arith.negf %212 : vector<2x128xf32>
    %214 = math.exp %213 : vector<2x128xf32>
    %cst_67 = arith.constant 1.000000e+00 : f32
    %215 = vector.broadcast %cst_67 : f32 to vector<2x128xf32>
    %216 = arith.addf %215, %214 : vector<2x128xf32>
    %217 = arith.divf %215, %216 : vector<2x128xf32>
    %218 = math.tanh %212 : vector<2x128xf32>
    %219 = vector.extract_strided_slice %217 {offsets = [0, 0], sizes = [2, 32], strides = [1, 1]} : vector<2x128xf32> to vector<2x32xf32>
    %220 = vector.extract_strided_slice %217 {offsets = [0, 32], sizes = [2, 32], strides = [1, 1]} : vector<2x128xf32> to vector<2x32xf32>
    %221 = vector.extract_strided_slice %218 {offsets = [0, 64], sizes = [2, 32], strides = [1, 1]} : vector<2x128xf32> to vector<2x32xf32>
    %222 = vector.extract_strided_slice %217 {offsets = [0, 96], sizes = [2, 32], strides = [1, 1]} : vector<2x128xf32> to vector<2x32xf32>
    %223 = arith.mulf %220, %178 : vector<2x32xf32>
    %224 = arith.mulf %219, %221 : vector<2x32xf32>
    %225 = arith.addf %223, %224 : vector<2x32xf32>
    %226 = math.tanh %225 : vector<2x32xf32>
    %227 = arith.mulf %222, %226 : vector<2x32xf32>
    %228 = arith.index_cast %208 : i32 to index
    %c0_68 = arith.constant 0 : index
    %229 = vector.load %arg10[%228, %c0_68] : memref<16x128xf32, #tpu.memory_space<vmem>>, vector<2x128xf32>
    %cst_69 = arith.constant dense<0.000000e+00> : vector<2x128xf32>
    %230 = tpu.matmul %199, %14, %cst_69 {dimension_numbers = #tpu.dot_dimension_numbers<[1], [0], [0], [1], [0, 0, 1, 1], [], []>} : vector<2x32xf32>, vector<32x128xf32>, vector<2x128xf32> -> vector<2x128xf32>
    %231 = arith.addf %229, %230 : vector<2x128xf32>
    %232 = arith.negf %231 : vector<2x128xf32>
    %233 = math.exp %232 : vector<2x128xf32>
    %cst_70 = arith.constant 1.000000e+00 : f32
    %234 = vector.broadcast %cst_70 : f32 to vector<2x128xf32>
    %235 = arith.addf %234, %233 : vector<2x128xf32>
    %236 = arith.divf %234, %235 : vector<2x128xf32>
    %237 = math.tanh %231 : vector<2x128xf32>
    %238 = vector.extract_strided_slice %236 {offsets = [0, 0], sizes = [2, 32], strides = [1, 1]} : vector<2x128xf32> to vector<2x32xf32>
    %239 = vector.extract_strided_slice %236 {offsets = [0, 32], sizes = [2, 32], strides = [1, 1]} : vector<2x128xf32> to vector<2x32xf32>
    %240 = vector.extract_strided_slice %237 {offsets = [0, 64], sizes = [2, 32], strides = [1, 1]} : vector<2x128xf32> to vector<2x32xf32>
    %241 = vector.extract_strided_slice %236 {offsets = [0, 96], sizes = [2, 32], strides = [1, 1]} : vector<2x128xf32> to vector<2x32xf32>
    %242 = arith.mulf %239, %197 : vector<2x32xf32>
    %243 = arith.mulf %238, %240 : vector<2x32xf32>
    %244 = arith.addf %242, %243 : vector<2x32xf32>
    %245 = math.tanh %244 : vector<2x32xf32>
    %246 = arith.mulf %241, %245 : vector<2x32xf32>
    %247 = arith.index_cast %205 : i32 to index
    %c0_71 = arith.constant 0 : index
    %248 = vector.load %arg11[%247, %c0_71] : memref<16x32xf32, #tpu.memory_space<vmem>>, vector<2x32xf32>
    tpu.vector_store %arg11[%247, %c0_71], %227 {strides = array<i32>} : memref<16x32xf32, #tpu.memory_space<vmem>>, vector<2x32xf32>,
    %249 = arith.index_cast %208 : i32 to index
    %c0_72 = arith.constant 0 : index
    %250 = vector.load %arg12[%249, %c0_72] : memref<16x32xf32, #tpu.memory_space<vmem>>, vector<2x32xf32>
    tpu.vector_store %arg12[%249, %c0_72], %246 {strides = array<i32>} : memref<16x32xf32, #tpu.memory_space<vmem>>, vector<2x32xf32>,
    %c5_i32 = arith.constant 5 : i32
    %c2_i32_73 = arith.constant 2 : i32
    %251 = arith.muli %c5_i32, %c2_i32_73 : i32
    %252 = tpu.assume_multiple %251, 2 : i32
    %c7_i32_74 = arith.constant 7 : i32
    %253 = arith.subi %c7_i32_74, %c5_i32 : i32
    %c2_i32_75 = arith.constant 2 : i32
    %254 = arith.muli %253, %c2_i32_75 : i32
    %255 = tpu.assume_multiple %254, 2 : i32
    %256 = arith.index_cast %252 : i32 to index
    %c0_76 = arith.constant 0 : index
    %257 = vector.load %arg9[%256, %c0_76] : memref<16x128xf32, #tpu.memory_space<vmem>>, vector<2x128xf32>
    %cst_77 = arith.constant dense<0.000000e+00> : vector<2x128xf32>
    %258 = tpu.matmul %227, %13, %cst_77 {dimension_numbers = #tpu.dot_dimension_numbers<[1], [0], [0], [1], [0, 0, 1, 1], [], []>} : vector<2x32xf32>, vector<32x128xf32>, vector<2x128xf32> -> vector<2x128xf32>
    %259 = arith.addf %257, %258 : vector<2x128xf32>
    %260 = arith.negf %259 : vector<2x128xf32>
    %261 = math.exp %260 : vector<2x128xf32>
    %cst_78 = arith.constant 1.000000e+00 : f32
    %262 = vector.broadcast %cst_78 : f32 to vector<2x128xf32>
    %263 = arith.addf %262, %261 : vector<2x128xf32>
    %264 = arith.divf %262, %263 : vector<2x128xf32>
    %265 = math.tanh %259 : vector<2x128xf32>
    %266 = vector.extract_strided_slice %264 {offsets = [0, 0], sizes = [2, 32], strides = [1, 1]} : vector<2x128xf32> to vector<2x32xf32>
    %267 = vector.extract_strided_slice %264 {offsets = [0, 32], sizes = [2, 32], strides = [1, 1]} : vector<2x128xf32> to vector<2x32xf32>
    %268 = vector.extract_strided_slice %265 {offsets = [0, 64], sizes = [2, 32], strides = [1, 1]} : vector<2x128xf32> to vector<2x32xf32>
    %269 = vector.extract_strided_slice %264 {offsets = [0, 96], sizes = [2, 32], strides = [1, 1]} : vector<2x128xf32> to vector<2x32xf32>
    %270 = arith.mulf %267, %225 : vector<2x32xf32>
    %271 = arith.mulf %266, %268 : vector<2x32xf32>
    %272 = arith.addf %270, %271 : vector<2x32xf32>
    %273 = math.tanh %272 : vector<2x32xf32>
    %274 = arith.mulf %269, %273 : vector<2x32xf32>
    %275 = arith.index_cast %255 : i32 to index
    %c0_79 = arith.constant 0 : index
    %276 = vector.load %arg10[%275, %c0_79] : memref<16x128xf32, #tpu.memory_space<vmem>>, vector<2x128xf32>
    %cst_80 = arith.constant dense<0.000000e+00> : vector<2x128xf32>
    %277 = tpu.matmul %246, %14, %cst_80 {dimension_numbers = #tpu.dot_dimension_numbers<[1], [0], [0], [1], [0, 0, 1, 1], [], []>} : vector<2x32xf32>, vector<32x128xf32>, vector<2x128xf32> -> vector<2x128xf32>
    %278 = arith.addf %276, %277 : vector<2x128xf32>
    %279 = arith.negf %278 : vector<2x128xf32>
    %280 = math.exp %279 : vector<2x128xf32>
    %cst_81 = arith.constant 1.000000e+00 : f32
    %281 = vector.broadcast %cst_81 : f32 to vector<2x128xf32>
    %282 = arith.addf %281, %280 : vector<2x128xf32>
    %283 = arith.divf %281, %282 : vector<2x128xf32>
    %284 = math.tanh %278 : vector<2x128xf32>
    %285 = vector.extract_strided_slice %283 {offsets = [0, 0], sizes = [2, 32], strides = [1, 1]} : vector<2x128xf32> to vector<2x32xf32>
    %286 = vector.extract_strided_slice %283 {offsets = [0, 32], sizes = [2, 32], strides = [1, 1]} : vector<2x128xf32> to vector<2x32xf32>
    %287 = vector.extract_strided_slice %284 {offsets = [0, 64], sizes = [2, 32], strides = [1, 1]} : vector<2x128xf32> to vector<2x32xf32>
    %288 = vector.extract_strided_slice %283 {offsets = [0, 96], sizes = [2, 32], strides = [1, 1]} : vector<2x128xf32> to vector<2x32xf32>
    %289 = arith.mulf %286, %244 : vector<2x32xf32>
    %290 = arith.mulf %285, %287 : vector<2x32xf32>
    %291 = arith.addf %289, %290 : vector<2x32xf32>
    %292 = math.tanh %291 : vector<2x32xf32>
    %293 = arith.mulf %288, %292 : vector<2x32xf32>
    %294 = arith.index_cast %252 : i32 to index
    %c0_82 = arith.constant 0 : index
    %295 = vector.load %arg11[%294, %c0_82] : memref<16x32xf32, #tpu.memory_space<vmem>>, vector<2x32xf32>
    tpu.vector_store %arg11[%294, %c0_82], %274 {strides = array<i32>} : memref<16x32xf32, #tpu.memory_space<vmem>>, vector<2x32xf32>,
    %296 = arith.index_cast %255 : i32 to index
    %c0_83 = arith.constant 0 : index
    %297 = vector.load %arg12[%296, %c0_83] : memref<16x32xf32, #tpu.memory_space<vmem>>, vector<2x32xf32>
    tpu.vector_store %arg12[%296, %c0_83], %293 {strides = array<i32>} : memref<16x32xf32, #tpu.memory_space<vmem>>, vector<2x32xf32>,
    %c6_i32 = arith.constant 6 : i32
    %c2_i32_84 = arith.constant 2 : i32
    %298 = arith.muli %c6_i32, %c2_i32_84 : i32
    %299 = tpu.assume_multiple %298, 2 : i32
    %c7_i32_85 = arith.constant 7 : i32
    %300 = arith.subi %c7_i32_85, %c6_i32 : i32
    %c2_i32_86 = arith.constant 2 : i32
    %301 = arith.muli %300, %c2_i32_86 : i32
    %302 = tpu.assume_multiple %301, 2 : i32
    %303 = arith.index_cast %299 : i32 to index
    %c0_87 = arith.constant 0 : index
    %304 = vector.load %arg9[%303, %c0_87] : memref<16x128xf32, #tpu.memory_space<vmem>>, vector<2x128xf32>
    %cst_88 = arith.constant dense<0.000000e+00> : vector<2x128xf32>
    %305 = tpu.matmul %274, %13, %cst_88 {dimension_numbers = #tpu.dot_dimension_numbers<[1], [0], [0], [1], [0, 0, 1, 1], [], []>} : vector<2x32xf32>, vector<32x128xf32>, vector<2x128xf32> -> vector<2x128xf32>
    %306 = arith.addf %304, %305 : vector<2x128xf32>
    %307 = arith.negf %306 : vector<2x128xf32>
    %308 = math.exp %307 : vector<2x128xf32>
    %cst_89 = arith.constant 1.000000e+00 : f32
    %309 = vector.broadcast %cst_89 : f32 to vector<2x128xf32>
    %310 = arith.addf %309, %308 : vector<2x128xf32>
    %311 = arith.divf %309, %310 : vector<2x128xf32>
    %312 = math.tanh %306 : vector<2x128xf32>
    %313 = vector.extract_strided_slice %311 {offsets = [0, 0], sizes = [2, 32], strides = [1, 1]} : vector<2x128xf32> to vector<2x32xf32>
    %314 = vector.extract_strided_slice %311 {offsets = [0, 32], sizes = [2, 32], strides = [1, 1]} : vector<2x128xf32> to vector<2x32xf32>
    %315 = vector.extract_strided_slice %312 {offsets = [0, 64], sizes = [2, 32], strides = [1, 1]} : vector<2x128xf32> to vector<2x32xf32>
    %316 = vector.extract_strided_slice %311 {offsets = [0, 96], sizes = [2, 32], strides = [1, 1]} : vector<2x128xf32> to vector<2x32xf32>
    %317 = arith.mulf %314, %272 : vector<2x32xf32>
    %318 = arith.mulf %313, %315 : vector<2x32xf32>
    %319 = arith.addf %317, %318 : vector<2x32xf32>
    %320 = math.tanh %319 : vector<2x32xf32>
    %321 = arith.mulf %316, %320 : vector<2x32xf32>
    %322 = arith.index_cast %302 : i32 to index
    %c0_90 = arith.constant 0 : index
    %323 = vector.load %arg10[%322, %c0_90] : memref<16x128xf32, #tpu.memory_space<vmem>>, vector<2x128xf32>
    %cst_91 = arith.constant dense<0.000000e+00> : vector<2x128xf32>
    %324 = tpu.matmul %293, %14, %cst_91 {dimension_numbers = #tpu.dot_dimension_numbers<[1], [0], [0], [1], [0, 0, 1, 1], [], []>} : vector<2x32xf32>, vector<32x128xf32>, vector<2x128xf32> -> vector<2x128xf32>
    %325 = arith.addf %323, %324 : vector<2x128xf32>
    %326 = arith.negf %325 : vector<2x128xf32>
    %327 = math.exp %326 : vector<2x128xf32>
    %cst_92 = arith.constant 1.000000e+00 : f32
    %328 = vector.broadcast %cst_92 : f32 to vector<2x128xf32>
    %329 = arith.addf %328, %327 : vector<2x128xf32>
    %330 = arith.divf %328, %329 : vector<2x128xf32>
    %331 = math.tanh %325 : vector<2x128xf32>
    %332 = vector.extract_strided_slice %330 {offsets = [0, 0], sizes = [2, 32], strides = [1, 1]} : vector<2x128xf32> to vector<2x32xf32>
    %333 = vector.extract_strided_slice %330 {offsets = [0, 32], sizes = [2, 32], strides = [1, 1]} : vector<2x128xf32> to vector<2x32xf32>
    %334 = vector.extract_strided_slice %331 {offsets = [0, 64], sizes = [2, 32], strides = [1, 1]} : vector<2x128xf32> to vector<2x32xf32>
    %335 = vector.extract_strided_slice %330 {offsets = [0, 96], sizes = [2, 32], strides = [1, 1]} : vector<2x128xf32> to vector<2x32xf32>
    %336 = arith.mulf %333, %291 : vector<2x32xf32>
    %337 = arith.mulf %332, %334 : vector<2x32xf32>
    %338 = arith.addf %336, %337 : vector<2x32xf32>
    %339 = math.tanh %338 : vector<2x32xf32>
    %340 = arith.mulf %335, %339 : vector<2x32xf32>
    %341 = arith.index_cast %299 : i32 to index
    %c0_93 = arith.constant 0 : index
    %342 = vector.load %arg11[%341, %c0_93] : memref<16x32xf32, #tpu.memory_space<vmem>>, vector<2x32xf32>
    tpu.vector_store %arg11[%341, %c0_93], %321 {strides = array<i32>} : memref<16x32xf32, #tpu.memory_space<vmem>>, vector<2x32xf32>,
    %343 = arith.index_cast %302 : i32 to index
    %c0_94 = arith.constant 0 : index
    %344 = vector.load %arg12[%343, %c0_94] : memref<16x32xf32, #tpu.memory_space<vmem>>, vector<2x32xf32>
    tpu.vector_store %arg12[%343, %c0_94], %340 {strides = array<i32>} : memref<16x32xf32, #tpu.memory_space<vmem>>, vector<2x32xf32>,
    %c7_i32_95 = arith.constant 7 : i32
    %c2_i32_96 = arith.constant 2 : i32
    %345 = arith.muli %c7_i32_95, %c2_i32_96 : i32
    %346 = tpu.assume_multiple %345, 2 : i32
    %c7_i32_97 = arith.constant 7 : i32
    %347 = arith.subi %c7_i32_97, %c7_i32_95 : i32
    %c2_i32_98 = arith.constant 2 : i32
    %348 = arith.muli %347, %c2_i32_98 : i32
    %349 = tpu.assume_multiple %348, 2 : i32
    %350 = arith.index_cast %346 : i32 to index
    %c0_99 = arith.constant 0 : index
    %351 = vector.load %arg9[%350, %c0_99] : memref<16x128xf32, #tpu.memory_space<vmem>>, vector<2x128xf32>
    %cst_100 = arith.constant dense<0.000000e+00> : vector<2x128xf32>
    %352 = tpu.matmul %321, %13, %cst_100 {dimension_numbers = #tpu.dot_dimension_numbers<[1], [0], [0], [1], [0, 0, 1, 1], [], []>} : vector<2x32xf32>, vector<32x128xf32>, vector<2x128xf32> -> vector<2x128xf32>
    %353 = arith.addf %351, %352 : vector<2x128xf32>
    %354 = arith.negf %353 : vector<2x128xf32>
    %355 = math.exp %354 : vector<2x128xf32>
    %cst_101 = arith.constant 1.000000e+00 : f32
    %356 = vector.broadcast %cst_101 : f32 to vector<2x128xf32>
    %357 = arith.addf %356, %355 : vector<2x128xf32>
    %358 = arith.divf %356, %357 : vector<2x128xf32>
    %359 = math.tanh %353 : vector<2x128xf32>
    %360 = vector.extract_strided_slice %358 {offsets = [0, 0], sizes = [2, 32], strides = [1, 1]} : vector<2x128xf32> to vector<2x32xf32>
    %361 = vector.extract_strided_slice %358 {offsets = [0, 32], sizes = [2, 32], strides = [1, 1]} : vector<2x128xf32> to vector<2x32xf32>
    %362 = vector.extract_strided_slice %359 {offsets = [0, 64], sizes = [2, 32], strides = [1, 1]} : vector<2x128xf32> to vector<2x32xf32>
    %363 = vector.extract_strided_slice %358 {offsets = [0, 96], sizes = [2, 32], strides = [1, 1]} : vector<2x128xf32> to vector<2x32xf32>
    %364 = arith.mulf %361, %319 : vector<2x32xf32>
    %365 = arith.mulf %360, %362 : vector<2x32xf32>
    %366 = arith.addf %364, %365 : vector<2x32xf32>
    %367 = math.tanh %366 : vector<2x32xf32>
    %368 = arith.mulf %363, %367 : vector<2x32xf32>
    %369 = arith.index_cast %349 : i32 to index
    %c0_102 = arith.constant 0 : index
    %370 = vector.load %arg10[%369, %c0_102] : memref<16x128xf32, #tpu.memory_space<vmem>>, vector<2x128xf32>
    %cst_103 = arith.constant dense<0.000000e+00> : vector<2x128xf32>
    %371 = tpu.matmul %340, %14, %cst_103 {dimension_numbers = #tpu.dot_dimension_numbers<[1], [0], [0], [1], [0, 0, 1, 1], [], []>} : vector<2x32xf32>, vector<32x128xf32>, vector<2x128xf32> -> vector<2x128xf32>
    %372 = arith.addf %370, %371 : vector<2x128xf32>
    %373 = arith.negf %372 : vector<2x128xf32>
    %374 = math.exp %373 : vector<2x128xf32>
    %cst_104 = arith.constant 1.000000e+00 : f32
    %375 = vector.broadcast %cst_104 : f32 to vector<2x128xf32>
    %376 = arith.addf %375, %374 : vector<2x128xf32>
    %377 = arith.divf %375, %376 : vector<2x128xf32>
    %378 = math.tanh %372 : vector<2x128xf32>
    %379 = vector.extract_strided_slice %377 {offsets = [0, 0], sizes = [2, 32], strides = [1, 1]} : vector<2x128xf32> to vector<2x32xf32>
    %380 = vector.extract_strided_slice %377 {offsets = [0, 32], sizes = [2, 32], strides = [1, 1]} : vector<2x128xf32> to vector<2x32xf32>
    %381 = vector.extract_strided_slice %378 {offsets = [0, 64], sizes = [2, 32], strides = [1, 1]} : vector<2x128xf32> to vector<2x32xf32>
    %382 = vector.extract_strided_slice %377 {offsets = [0, 96], sizes = [2, 32], strides = [1, 1]} : vector<2x128xf32> to vector<2x32xf32>
    %383 = arith.mulf %380, %338 : vector<2x32xf32>
    %384 = arith.mulf %379, %381 : vector<2x32xf32>
    %385 = arith.addf %383, %384 : vector<2x32xf32>
    %386 = math.tanh %385 : vector<2x32xf32>
    %387 = arith.mulf %382, %386 : vector<2x32xf32>
    %388 = arith.index_cast %346 : i32 to index
    %c0_105 = arith.constant 0 : index
    %389 = vector.load %arg11[%388, %c0_105] : memref<16x32xf32, #tpu.memory_space<vmem>>, vector<2x32xf32>
    tpu.vector_store %arg11[%388, %c0_105], %368 {strides = array<i32>} : memref<16x32xf32, #tpu.memory_space<vmem>>, vector<2x32xf32>,
    %390 = arith.index_cast %349 : i32 to index
    %c0_106 = arith.constant 0 : index
    %391 = vector.load %arg12[%390, %c0_106] : memref<16x32xf32, #tpu.memory_space<vmem>>, vector<2x32xf32>
    tpu.vector_store %arg12[%390, %c0_106], %387 {strides = array<i32>} : memref<16x32xf32, #tpu.memory_space<vmem>>, vector<2x32xf32>,
    %c8_i32 = arith.constant 8 : i32
    %c0_107 = arith.constant 0 : index
    %c0_108 = arith.constant 0 : index
    %392 = vector.load %arg11[%c0_107, %c0_108] : memref<16x32xf32, #tpu.memory_space<vmem>>, vector<16x32xf32>
    %c0_109 = arith.constant 0 : index
    %c0_110 = arith.constant 0 : index
    %393 = vector.load %arg8[%c0_109, %c0_110] : memref<16x64xf32, #tpu.memory_space<vmem>>, vector<16x32xf32>
    tpu.vector_store %arg8[%c0_109, %c0_110], %392 {strides = array<i32>} : memref<16x64xf32, #tpu.memory_space<vmem>>, vector<16x32xf32>,
    %c0_111 = arith.constant 0 : index
    %c0_112 = arith.constant 0 : index
    %394 = vector.load %arg12[%c0_111, %c0_112] : memref<16x32xf32, #tpu.memory_space<vmem>>, vector<16x32xf32>
    %c0_113 = arith.constant 0 : index
    %c32 = arith.constant 32 : index
    %395 = vector.load %arg8[%c0_113, %c32] : memref<16x64xf32, #tpu.memory_space<vmem>>, vector<16x32xf32>
    tpu.vector_store %arg8[%c0_113, %c32], %394 {strides = array<i32>} : memref<16x64xf32, #tpu.memory_space<vmem>>, vector<16x32xf32>,
    return
  }
  func.func @transform_0(%arg0: i32) -> (i32, i32) {
    %c0_i32 = arith.constant 0 : i32
    %c0_i32_0 = arith.constant 0 : i32
    %c0_i32_1 = arith.constant 0 : i32
    return %c0_i32, %c0_i32_0 : i32, i32
  }
  func.func @transform_1(%arg0: i32) -> (i32, i32) {
    %c0_i32 = arith.constant 0 : i32
    %c0_i32_0 = arith.constant 0 : i32
    %c0_i32_1 = arith.constant 0 : i32
    return %c0_i32, %c0_i32_0 : i32, i32
  }
  func.func @transform_2(%arg0: i32) -> (i32, i32) {
    %c0_i32 = arith.constant 0 : i32
    %c0_i32_0 = arith.constant 0 : i32
    %c0_i32_1 = arith.constant 0 : i32
    return %c0_i32, %c0_i32_0 : i32, i32
  }
  func.func @transform_3(%arg0: i32) -> (i32, i32) {
    %c0_i32 = arith.constant 0 : i32
    %c0_i32_0 = arith.constant 0 : i32
    %c0_i32_1 = arith.constant 0 : i32
    return %c0_i32, %c0_i32_0 : i32, i32
  }
  func.func @transform_4(%arg0: i32) -> (i32, i32) {
    %c0_i32 = arith.constant 0 : i32
    %c0_i32_0 = arith.constant 0 : i32
    %c0_i32_1 = arith.constant 0 : i32
    return %c0_i32, %c0_i32_0 : i32, i32
  }
  func.func @transform_5(%arg0: i32) -> (i32, i32) {
    %c0_i32 = arith.constant 0 : i32
    %c0_i32_0 = arith.constant 0 : i32
    %c0_i32_1 = arith.constant 0 : i32
    return %c0_i32, %c0_i32_0 : i32, i32
  }
  func.func @transform_6(%arg0: i32) -> (i32, i32) {
    %c0_i32 = arith.constant 0 : i32
    %c0_i32_0 = arith.constant 0 : i32
    %c0_i32_1 = arith.constant 0 : i32
    return %c0_i32, %c0_i32_0 : i32, i32
  }
  func.func @transform_7(%arg0: i32) -> (i32, i32) {
    %c0_i32 = arith.constant 0 : i32
    %c0_i32_0 = arith.constant 0 : i32
    %c0_i32_1 = arith.constant 0 : i32
    return %c0_i32, %c0_i32_0 : i32, i32
  }
}

</mosaic_0001>

<llo_original>
// kernel: tpu_custom_call.1
$region0: #{tpu_custom_call.1}
  #allocation0 [shape = 'u32[]', space=smem, size = 0x4, offset = 0x4, fixed_abs, tag = 'smem constant byte address 0x4 - core index']
  #allocation1 [shape = 'u32[144,128]{1,0:T(1,128)}', space=vmem, size = 0x12000, scoped, tag = 'internal scratch']
  #allocation2 [shape = 'f32[16,128]{1,0:T(8,128)}', space=vmem, size = 0x2000, scoped, tag = 'scratch operand']
  #allocation3 [shape = 'f32[16,128]{1,0:T(8,128)}', space=vmem, size = 0x2000, scoped, tag = 'scratch operand']
  #allocation4 [shape = 'f32[16,32]{1,0:T(8,128)}', space=vmem, size = 0x2000, scoped, tag = 'scratch operand']
  #allocation5 [shape = 'f32[16,32]{1,0:T(8,128)}', space=vmem, size = 0x2000, scoped, tag = 'scratch operand']
  %s0 = inlined_call_operand.hbm [shape: f32[16,32], index: 0, kind: input, shape index: {}]
  %s1 = inlined_call_operand.hbm [shape: f32[32,128], index: 1, kind: input, shape index: {}]
  %s2 = inlined_call_operand.hbm [shape: f32[32,128], index: 2, kind: input, shape index: {}]
  %s3 = inlined_call_operand.vmem [shape: f32[1,128], index: 3, kind: input, shape index: {}]
  %s4 = inlined_call_operand.hbm [shape: f32[32,128], index: 4, kind: input, shape index: {}]
  %s5 = inlined_call_operand.hbm [shape: f32[32,128], index: 5, kind: input, shape index: {}]
  %s6 = inlined_call_operand.vmem [shape: f32[1,128], index: 6, kind: input, shape index: {}]
  %s7 = inlined_call_operand.hbm [shape: f32[16,64], index: 7, kind: output, shape index: {}]
  %s8 = sld [smem:[#allocation0]]
  $region58: #{tpu_custom_call.1} parent=0
    _
  %s10 = ssub.s32 1, %s8
  %s11 = scalar_select 0, %s10, %s8
  $region1: #{tpu_custom_call.1} parent=0
    #allocation6 [shape = 'u8[8192]{0}', space=vmem, size = 0x2000, scoped, tag = 'input window, operand 0, single buffered']
    #allocation7 [shape = 's32[1]{0}', space=sflag, size = 0x4, scoped, tag = 'scoped memory for tpu_custom_call.1']
    #allocation8 [shape = 's32[1]{0}', space=sflag, size = 0x4, scoped, tag = 'scoped memory for tpu_custom_call.1']
    #allocation9 [shape = 'u8[16384]{0}', space=vmem, size = 0x4000, scoped, tag = 'input window, operand 1, single buffered']
    #allocation10 [shape = 's32[1]{0}', space=sflag, size = 0x4, scoped, tag = 'scoped memory for tpu_custom_call.1']
    #allocation11 [shape = 'u8[16384]{0}', space=vmem, size = 0x4000, scoped, tag = 'input window, operand 2, single buffered']
    #allocation12 [shape = 'u8[16384]{0}', space=vmem, size = 0x4000, scoped, tag = 'input window, operand 4, single buffered']
    #allocation13 [shape = 's32[1]{0}', space=sflag, size = 0x4, scoped, tag = 'scoped memory for tpu_custom_call.1']
    #allocation14 [shape = 'u8[16384]{0}', space=vmem, size = 0x4000, scoped, tag = 'input window, operand 5, single buffered']
    #allocation15 [shape = 'u8[8192]{0}', space=vmem, size = 0x2000, scoped, tag = 'output window, operand 0, single buffered']
    %12 = vsyncpa [#allocation7], 0
    %13 = vsyncpa [#allocation10], 0
    %14 = vsyncpa [#allocation13], 0
    %15 = vsyncpa [#allocation8], 0
    // Predicated region
    $region2: #{tpu_custom_call.1} parent=1 // pred_check
      _
    $region3: #{tpu_custom_call.1} parent=1 // pred_check_branch
      %17 = sbr.rel (0) target = $region5
    $region4: #{tpu_custom_call.1} parent=1 // pred_region
      %s19 = ssub.s32 256, 256
      %20 = vsyncadd [#allocation7], %s19
      %s21 = sshll.u32 [#allocation6], 4
      %s22 = int_to_ptr.vmem [resolvable:$true] %s21
      %27 = dma.hbm_to_vmem [thread:$0]  %s0, 256, %s22, [#allocation7], 128, 128, 8
    $region5: #{tpu_custom_call.1} parent=1 // pred_fallthru
      _
    // Predicated region
    $region6: #{tpu_custom_call.1} parent=1 // pred_check
      _
    $region7: #{tpu_custom_call.1} parent=1 // pred_check_branch
      %29 = sbr.rel (0) target = $region9
    $region8: #{tpu_custom_call.1} parent=1 // pred_region
      %s31 = ssub.s32 512, 512
      %32 = vsyncadd [#allocation10], %s31
      %s33 = sshll.u32 [#allocation9], 4
      %s34 = int_to_ptr.vmem [resolvable:$true] %s33
      %39 = dma.hbm_to_vmem [thread:$0]  %s1, 512, %s34, [#allocation10], 128, 128, 8
    $region9: #{tpu_custom_call.1} parent=1 // pred_fallthru
      _
    // Predicated region
    $region10: #{tpu_custom_call.1} parent=1 // pred_check
      _
    $region11: #{tpu_custom_call.1} parent=1 // pred_check_branch
      %41 = sbr.rel (0) target = $region13
    $region12: #{tpu_custom_call.1} parent=1 // pred_region
      %s43 = ssub.s32 512, 512
      %44 = vsyncadd [#allocation10], %s43
      %s45 = sshll.u32 [#allocation11], 4
      %s46 = int_to_ptr.vmem [resolvable:$true] %s45
      %51 = dma.hbm_to_vmem [thread:$0]  %s2, 512, %s46, [#allocation10], 128, 128, 8
    $region13: #{tpu_custom_call.1} parent=1 // pred_fallthru
      _
    // Predicated region
    $region14: #{tpu_custom_call.1} parent=1 // pred_check
      _
    $region15: #{tpu_custom_call.1} parent=1 // pred_check_branch
      %53 = sbr.rel (0) target = $region17
    $region16: #{tpu_custom_call.1} parent=1 // pred_region
      _
    $region17: #{tpu_custom_call.1} parent=1 // pred_fallthru
      _
    // Predicated region
    $region18: #{tpu_custom_call.1} parent=1 // pred_check
      _
    $region19: #{tpu_custom_call.1} parent=1 // pred_check_branch
      %55 = sbr.rel (0) target = $region21
    $region20: #{tpu_custom_call.1} parent=1 // pred_region
      %s57 = ssub.s32 512, 512
      %58 = vsyncadd [#allocation13], %s57
      %s59 = sshll.u32 [#allocation12], 4
      %s60 = int_to_ptr.vmem [resolvable:$true] %s59
      %65 = dma.hbm_to_vmem [thread:$0]  %s4, 512, %s60, [#allocation13], 128, 128, 8
    $region21: #{tpu_custom_call.1} parent=1 // pred_fallthru
      _
    // Predicated region
    $region22: #{tpu_custom_call.1} parent=1 // pred_check
      _
    $region23: #{tpu_custom_call.1} parent=1 // pred_check_branch
      %67 = sbr.rel (0) target = $region25
    $region24: #{tpu_custom_call.1} parent=1 // pred_region
      %s69 = ssub.s32 512, 512
      %70 = vsyncadd [#allocation13], %s69
      %s71 = sshll.u32 [#allocation14], 4
      %s72 = int_to_ptr.vmem [resolvable:$true] %s71
      %77 = dma.hbm_to_vmem [thread:$0]  %s5, 512, %s72, [#allocation13], 128, 128, 8
    $region25: #{tpu_custom_call.1} parent=1 // pred_fallthru
      _
    // Predicated region
    $region26: #{tpu_custom_call.1} parent=1 // pred_check
      _
    $region27: #{tpu_custom_call.1} parent=1 // pred_check_branch
      %79 = sbr.rel (0) target = $region29
    $region28: #{tpu_custom_call.1} parent=1 // pred_region
      _
    $region29: #{tpu_custom_call.1} parent=1 // pred_fallthru
      _
    // Predicated region
    $region30: #{tpu_custom_call.1} parent=1 // pred_check
      _
    $region31: #{tpu_custom_call.1} parent=1 // pred_check_branch
      %81 = sbr.rel (0) target = $region33
    $region32: #{tpu_custom_call.1} parent=1 // pred_region
      %82 = dma.done [#allocation7], 256
    $region33: #{tpu_custom_call.1} parent=1 // pred_fallthru
      _
    // Predicated region
    $region34: #{tpu_custom_call.1} parent=1 // pred_check
      _
    $region35: #{tpu_custom_call.1} parent=1 // pred_check_branch
      %84 = sbr.rel (0) target = $region37
    $region36: #{tpu_custom_call.1} parent=1 // pred_region
      %85 = dma.done [#allocation10], 512
    $region37: #{tpu_custom_call.1} parent=1 // pred_fallthru
      _
    // Predicated region
    $region38: #{tpu_custom_call.1} parent=1 // pred_check
      _
    $region39: #{tpu_custom_call.1} parent=1 // pred_check_branch
      %87 = sbr.rel (0) target = $region41
    $region40: #{tpu_custom_call.1} parent=1 // pred_region
      %88 = dma.done [#allocation10], 512
    $region41: #{tpu_custom_call.1} parent=1 // pred_fallthru
      _
    // Predicated region
    $region42: #{tpu_custom_call.1} parent=1 // pred_check
      _
    $region43: #{tpu_custom_call.1} parent=1 // pred_check_branch
      %90 = sbr.rel (0) target = $region45
    $region44: #{tpu_custom_call.1} parent=1 // pred_region
      %91 = dma.done [#allocation13], 512
    $region45: #{tpu_custom_call.1} parent=1 // pred_fallthru
      _
    // Predicated region
    $region46: #{tpu_custom_call.1} parent=1 // pred_check
      _
    $region47: #{tpu_custom_call.1} parent=1 // pred_check_branch
      %93 = sbr.rel (0) target = $region49
    $region48: #{tpu_custom_call.1} parent=1 // pred_region
      %94 = dma.done [#allocation13], 512
    $region49: #{tpu_custom_call.1} parent=1 // pred_fallthru
      _
    %v95 = vld [vmem:[#allocation6] sm:$0xff]
    %v96 = vld [vmem:[#allocation6 + $0x8] sm:$0xff]
    %v97 = vld [vmem:[#allocation9] sm:$0xff]
    %v98 = vld [vmem:[#allocation9 + $0x8] sm:$0xff]
    %v99 = vld [vmem:[#allocation9 + $0x10] sm:$0xff]
    %v100 = vld [vmem:[#allocation9 + $0x18] sm:$0xff]
    %v101 = vld [vmem:[%s3] sm:$0x1]
    %v103 = vlaneseq
    %v104 = vshrl.u32 %v103, 7
    %v105 = vsub.s32 0, %v104
    %v106 = vrot.slane %v101, %v105
    %vm108 = vcmask 261120
    %v110 = vsel %vm108, %v95, 0
    %v113 = vsel %vm108, %v96, 0
    %115 = vmatprep.subr.mxu0 0.0
    %116 = vmatpush1.msra.mxu0 %v97
    %117 = vmatprep.subr.mxu0 0.0
    %118 = vmatpush1.msra.mxu0 %v98
    %119 = vmatprep.subr.mxu0 0.0
    %120 = vmatpush1.msra.mxu0 %v99
    %121 = vmatprep.subr.mxu0 0.0
    %122 = vmatpush1.msra.mxu0 %v100
    %123 = vmatprep.subr.mxu0 0.0
    %124 = vmatpush1.msra.mxu0 0.0
    %125 = vmatprep.subr.mxu0 0.0
    %126 = vmatpush1.msra.mxu0 0.0
    %127 = vmatprep.subr.mxu0 0.0
    %128 = vmatpush1.msra.mxu0 0.0
    %129 = vmatprep.subr.mxu0 0.0
    %130 = vmatpush1.msra.mxu0 0.0
    %131 = vmatprep.subr.mxu0 0.0
    %132 = vmatpush1.msra.mxu0 0.0
    %133 = vmatprep.subr.mxu0 0.0
    %134 = vmatpush1.msra.mxu0 0.0
    %135 = vmatprep.subr.mxu0 0.0
    %136 = vmatpush1.msra.mxu0 0.0
    %137 = vmatprep.subr.mxu0 0.0
    %138 = vmatpush1.msra.mxu0 0.0
    %139 = vmatprep.subr.mxu0 0.0
    %140 = vmatpush1.msra.mxu0 0.0
    %141 = vmatprep.subr.mxu0 0.0
    %142 = vmatpush1.msra.mxu0 0.0
    %143 = vmatprep.subr.mxu0 0.0
    %144 = vmatpush1.msra.mxu0 0.0
    %145 = vmatprep.subr.mxu0 0.0
    %146 = vmatpush1.msra.mxu0 0.0
    %147 = vmatprep.subr.mxu0 0.0
    %148 = vmatpush1.msra.mxu0 0.0
    %149 = vmatprep.subr.mxu0 0.0
    %150 = vmatpush1.msra.mxu0 0.0
    %151 = vmatprep.subr.mxu0 0.0
    %152 = vmatpush1.msra.mxu0 0.0
    %153 = vmatprep.subr.mxu0 0.0
    %154 = vmatpush1.msra.mxu0 0.0
    %155 = vmatprep.subr.mxu0 0.0
    %156 = vmatpush1.msra.mxu0 0.0
    %157 = vmatprep.subr.mxu0 0.0
    %158 = vmatpush1.msra.mxu0 0.0
    %159 = vmatprep.subr.mxu0 0.0
    %160 = vmatpush1.msra.mxu0 0.0
    %161 = vmatprep.subr.mxu0 0.0
    %162 = vmatpush1.msra.mxu0 0.0
    %163 = vmatprep.subr.mxu0 0.0
    %164 = vmatpush1.msra.mxu0 0.0
    %165 = vmatprep.subr.mxu0 0.0
    %166 = vmatpush1.msra.mxu0 0.0
    %167 = vmatprep.subr.mxu0 0.0
    %168 = vmatpush1.msra.mxu0 0.0
    %169 = vmatprep.subr.mxu0 0.0
    %170 = vmatpush1.msra.mxu0 0.0
    %171 = vmatprep.subr.mxu0 0.0
    %172 = vmatpush1.msra.mxu0 0.0
    %173 = vmatprep.subr.mxu0 0.0
    %174 = vmatpush1.msra.mxu0 0.0
    %175 = vmatprep.subr.mxu0 0.0
    %176 = vmatpush1.msra.mxu0 0.0
    %177 = vmatprep.subr.mxu0 0.0
    %178 = vmatpush1.msra.mxu0 0.0
    %179 = vmatprep.mubr.f32.mxu0 0.0
    %180 = vmatmul.mubr.f32.gmra.mrb[0].mxu0 %v110
    %v181 = vpop.f32.mrb[0].mxu0
    %v182 = vadd.f32 %v106, %v181
    %v183 = vpop.f32.mrb[0].mxu0
    %184 = vmatprep.mubr.f32.mxu0 0.0
    %185 = vmatmul.mubr.f32.gmra.mrb[0].mxu0 %v113
    %v186 = vpop.f32.mrb[0].mxu0
    %v187 = vadd.f32 %v106, %v186
    %v188 = vpop.f32.mrb[0].mxu0
    %189 = vdwg.mxu0
    %190 = vst [vmem:[#allocation2] sm:$0xff] %v182
    %191 = vst [vmem:[#allocation2 + $0x8] sm:$0xff] %v187
    %v192 = vld [vmem:[#allocation12] sm:$0xff]
    %v193 = vld [vmem:[#allocation12 + $0x8] sm:$0xff]
    %v194 = vld [vmem:[#allocation12 + $0x10] sm:$0xff]
    %v195 = vld [vmem:[#allocation12 + $0x18] sm:$0xff]
    %v196 = vld [vmem:[%s6] sm:$0x1]
    %v198 = vlaneseq
    %v199 = vshrl.u32 %v198, 7
    %v200 = vsub.s32 0, %v199
    %v201 = vrot.slane %v196, %v200
    %203 = vmatprep.subr.mxu0 0.0
    %204 = vmatpush1.msra.mxu0 %v192
    %205 = vmatprep.subr.mxu0 0.0
    %206 = vmatpush1.msra.mxu0 %v193
    %207 = vmatprep.subr.mxu0 0.0
    %208 = vmatpush1.msra.mxu0 %v194
    %209 = vmatprep.subr.mxu0 0.0
    %210 = vmatpush1.msra.mxu0 %v195
    %211 = vmatprep.subr.mxu0 0.0
    %212 = vmatpush1.msra.mxu0 0.0
    %213 = vmatprep.subr.mxu0 0.0
    %214 = vmatpush1.msra.mxu0 0.0
    %215 = vmatprep.subr.mxu0 0.0
    %216 = vmatpush1.msra.mxu0 0.0
    %217 = vmatprep.subr.mxu0 0.0
    %218 = vmatpush1.msra.mxu0 0.0
    %219 = vmatprep.subr.mxu0 0.0
    %220 = vmatpush1.msra.mxu0 0.0
    %221 = vmatprep.subr.mxu0 0.0
    %222 = vmatpush1.msra.mxu0 0.0
    %223 = vmatprep.subr.mxu0 0.0
    %224 = vmatpush1.msra.mxu0 0.0
    %225 = vmatprep.subr.mxu0 0.0
    %226 = vmatpush1.msra.mxu0 0.0
    %227 = vmatprep.subr.mxu0 0.0
    %228 = vmatpush1.msra.mxu0 0.0
    %229 = vmatprep.subr.mxu0 0.0
    %230 = vmatpush1.msra.mxu0 0.0
    %231 = vmatprep.subr.mxu0 0.0
    %232 = vmatpush1.msra.mxu0 0.0
    %233 = vmatprep.subr.mxu0 0.0
    %234 = vmatpush1.msra.mxu0 0.0
    %235 = vmatprep.subr.mxu0 0.0
    %236 = vmatpush1.msra.mxu0 0.0
    %237 = vmatprep.subr.mxu0 0.0
    %238 = vmatpush1.msra.mxu0 0.0
    %239 = vmatprep.subr.mxu0 0.0
    %240 = vmatpush1.msra.mxu0 0.0
    %241 = vmatprep.subr.mxu0 0.0
    %242 = vmatpush1.msra.mxu0 0.0
    %243 = vmatprep.subr.mxu0 0.0
    %244 = vmatpush1.msra.mxu0 0.0
    %245 = vmatprep.subr.mxu0 0.0
    %246 = vmatpush1.msra.mxu0 0.0
    %247 = vmatprep.subr.mxu0 0.0
    %248 = vmatpush1.msra.mxu0 0.0
    %249 = vmatprep.subr.mxu0 0.0
    %250 = vmatpush1.msra.mxu0 0.0
    %251 = vmatprep.subr.mxu0 0.0
    %252 = vmatpush1.msra.mxu0 0.0
    %253 = vmatprep.subr.mxu0 0.0
    %254 = vmatpush1.msra.mxu0 0.0
    %255 = vmatprep.subr.mxu0 0.0
    %256 = vmatpush1.msra.mxu0 0.0
    %257 = vmatprep.subr.mxu0 0.0
    %258 = vmatpush1.msra.mxu0 0.0
    %259 = vmatprep.subr.mxu0 0.0
    %260 = vmatpush1.msra.mxu0 0.0
    %261 = vmatprep.subr.mxu0 0.0
    %262 = vmatpush1.msra.mxu0 0.0
    %263 = vmatprep.subr.mxu0 0.0
    %264 = vmatpush1.msra.mxu0 0.0
    %265 = vmatprep.subr.mxu0 0.0
    %266 = vmatpush1.msra.mxu0 0.0
    %267 = vmatprep.mubr.f32.mxu0 0.0
    %268 = vmatmul.mubr.f32.gmra.mrb[0].mxu0 %v110
    %v269 = vpop.f32.mrb[0].mxu0
    %v270 = vadd.f32 %v201, %v269
    %v271 = vpop.f32.mrb[0].mxu0
    %272 = vmatprep.mubr.f32.mxu0 0.0
    %273 = vmatmul.mubr.f32.gmra.mrb[0].mxu0 %v113
    %v274 = vpop.f32.mrb[0].mxu0
    %v275 = vadd.f32 %v201, %v274
    %v276 = vpop.f32.mrb[0].mxu0
    %277 = vdwg.mxu0
    %278 = vst [vmem:[#allocation3] sm:$0xff] %v270
    %279 = vst [vmem:[#allocation3 + $0x8] sm:$0xff] %v275
    %v280 = vld [vmem:[#allocation11] sm:$0xff]
    %v281 = vld [vmem:[#allocation11 + $0x8] sm:$0xff]
    %v282 = vld [vmem:[#allocation11 + $0x10] sm:$0xff]
    %v283 = vld [vmem:[#allocation11 + $0x18] sm:$0xff]
    %v284 = vld [vmem:[#allocation14] sm:$0xff]
    %v285 = vld [vmem:[#allocation14 + $0x8] sm:$0xff]
    %v286 = vld [vmem:[#allocation14 + $0x10] sm:$0xff]
    %v287 = vld [vmem:[#allocation14 + $0x18] sm:$0xff]
    %v288 = vld [vmem:[#allocation2] sm:$0x3]
    %v290 = vsel %vm108, 0.0, 0
    %292 = vmatprep.subr.mxu0 0.0
    %293 = vmatpush1.msra.mxu0 %v280
    %294 = vmatprep.subr.mxu0 0.0
    %295 = vmatpush1.msra.mxu0 %v281
    %296 = vmatprep.subr.mxu0 0.0
    %297 = vmatpush1.msra.mxu0 %v282
    %298 = vmatprep.subr.mxu0 0.0
    %299 = vmatpush1.msra.mxu0 %v283
    %300 = vmatprep.subr.mxu0 0.0
    %301 = vmatpush1.msra.mxu0 0.0
    %302 = vmatprep.subr.mxu0 0.0
    %303 = vmatpush1.msra.mxu0 0.0
    %304 = vmatprep.subr.mxu0 0.0
    %305 = vmatpush1.msra.mxu0 0.0
    %306 = vmatprep.subr.mxu0 0.0
    %307 = vmatpush1.msra.mxu0 0.0
    %308 = vmatprep.subr.mxu0 0.0
    %309 = vmatpush1.msra.mxu0 0.0
    %310 = vmatprep.subr.mxu0 0.0
    %311 = vmatpush1.msra.mxu0 0.0
    %312 = vmatprep.subr.mxu0 0.0
    %313 = vmatpush1.msra.mxu0 0.0
    %314 = vmatprep.subr.mxu0 0.0
    %315 = vmatpush1.msra.mxu0 0.0
    %316 = vmatprep.subr.mxu0 0.0
    %317 = vmatpush1.msra.mxu0 0.0
    %318 = vmatprep.subr.mxu0 0.0
    %319 = vmatpush1.msra.mxu0 0.0
    %320 = vmatprep.subr.mxu0 0.0
    %321 = vmatpush1.msra.mxu0 0.0
    %322 = vmatprep.subr.mxu0 0.0
    %323 = vmatpush1.msra.mxu0 0.0
    %324 = vmatprep.subr.mxu0 0.0
    %325 = vmatpush1.msra.mxu0 0.0
    %326 = vmatprep.subr.mxu0 0.0
    %327 = vmatpush1.msra.mxu0 0.0
    %328 = vmatprep.subr.mxu0 0.0
    %329 = vmatpush1.msra.mxu0 0.0
    %330 = vmatprep.subr.mxu0 0.0
    %331 = vmatpush1.msra.mxu0 0.0
    %332 = vmatprep.subr.mxu0 0.0
    %333 = vmatpush1.msra.mxu0 0.0
    %334 = vmatprep.subr.mxu0 0.0
    %335 = vmatpush1.msra.mxu0 0.0
    %336 = vmatprep.subr.mxu0 0.0
    %337 = vmatpush1.msra.mxu0 0.0
    %338 = vmatprep.subr.mxu0 0.0
    %339 = vmatpush1.msra.mxu0 0.0
    %340 = vmatprep.subr.mxu0 0.0
    %341 = vmatpush1.msra.mxu0 0.0
    %342 = vmatprep.subr.mxu0 0.0
    %343 = vmatpush1.msra.mxu0 0.0
    %344 = vmatprep.subr.mxu0 0.0
    %345 = vmatpush1.msra.mxu0 0.0
    %346 = vmatprep.subr.mxu0 0.0
    %347 = vmatpush1.msra.mxu0 0.0
    %348 = vmatprep.subr.mxu0 0.0
    %349 = vmatpush1.msra.mxu0 0.0
    %350 = vmatprep.subr.mxu0 0.0
    %351 = vmatpush1.msra.mxu0 0.0
    %352 = vmatprep.subr.mxu0 0.0
    %353 = vmatpush1.msra.mxu0 0.0
    %354 = vmatprep.subr.mxu0 0.0
    %355 = vmatpush1.msra.mxu0 0.0
    %356 = vmatprep.mubr.f32.mxu0 0.0
    %357 = vmatmul.mubr.f32.gmra.mrb[0].mxu0 %v290
    %v358 = vpop.f32.mrb[0].mxu0
    %v359 = vadd.f32 0.0, %v358
    %v360 = vpop.f32.mrb[0].mxu0
    %361 = vdwg.mxu0
    %v362 = vadd.f32 %v288, %v359
    %v363 = vxor.u32 %v362, 2147483648
    %v364 = vmul.f32 %v363, 1.442695
    %v365 = vpow.pop %v364
    %v366 = vadd.f32 %v365, 1.0
    %v367 = vrcp.pop %v366
    %v368 = vmul.f32 1.0, %v367
    %v369 = vtanh.pop %v362
    %v370 = vmul.f32 %v368, 0.0
    %372 = vrot.lane.b32.xlu0 %v369, 64
    %v373 = vpop.permute.xlu0 %372
    %v375 = vmul.f32 %v368, %v373
    %377 = vrot.lane.b32.xlu0 %v375, 32
    %v378 = vpop.permute.xlu0 %377
    %v380 = vadd.f32 %v370, %v378
    %v381 = vtanh.pop %v380
    %383 = vrot.lane.b32.xlu0 %v381, 64
    %v384 = vpop.permute.xlu0 %383
    %v386 = vmul.f32 %v368, %v384
    %s387 = scalar_lea.vmem [#allocation3], 14
    %v388 = vld [vmem:[%s387] sm:$0x3]
    %389 = vmatprep.subr.mxu0 0.0
    %390 = vmatpush1.msra.mxu0 %v284
    %391 = vmatprep.subr.mxu0 0.0
    %392 = vmatpush1.msra.mxu0 %v285
    %393 = vmatprep.subr.mxu0 0.0
    %394 = vmatpush1.msra.mxu0 %v286
    %395 = vmatprep.subr.mxu0 0.0
    %396 = vmatpush1.msra.mxu0 %v287
    %397 = vmatprep.subr.mxu0 0.0
    %398 = vmatpush1.msra.mxu0 0.0
    %399 = vmatprep.subr.mxu0 0.0
    %400 = vmatpush1.msra.mxu0 0.0
    %401 = vmatprep.subr.mxu0 0.0
    %402 = vmatpush1.msra.mxu0 0.0
    %403 = vmatprep.subr.mxu0 0.0
    %404 = vmatpush1.msra.mxu0 0.0
    %405 = vmatprep.subr.mxu0 0.0
    %406 = vmatpush1.msra.mxu0 0.0
    %407 = vmatprep.subr.mxu0 0.0
    %408 = vmatpush1.msra.mxu0 0.0
    %409 = vmatprep.subr.mxu0 0.0
    %410 = vmatpush1.msra.mxu0 0.0
    %411 = vmatprep.subr.mxu0 0.0
    %412 = vmatpush1.msra.mxu0 0.0
    %413 = vmatprep.subr.mxu0 0.0
    %414 = vmatpush1.msra.mxu0 0.0
    %415 = vmatprep.subr.mxu0 0.0
    %416 = vmatpush1.msra.mxu0 0.0
    %417 = vmatprep.subr.mxu0 0.0
    %418 = vmatpush1.msra.mxu0 0.0
    %419 = vmatprep.subr.mxu0 0.0
    %420 = vmatpush1.msra.mxu0 0.0
    %421 = vmatprep.subr.mxu0 0.0
    %422 = vmatpush1.msra.mxu0 0.0
    %423 = vmatprep.subr.mxu0 0.0
    %424 = vmatpush1.msra.mxu0 0.0
    %425 = vmatprep.subr.mxu0 0.0
    %426 = vmatpush1.msra.mxu0 0.0
    %427 = vmatprep.subr.mxu0 0.0
    %428 = vmatpush1.msra.mxu0 0.0
    %429 = vmatprep.subr.mxu0 0.0
    %430 = vmatpush1.msra.mxu0 0.0
    %431 = vmatprep.subr.mxu0 0.0
    %432 = vmatpush1.msra.mxu0 0.0
    %433 = vmatprep.subr.mxu0 0.0
    %434 = vmatpush1.msra.mxu0 0.0
    %435 = vmatprep.subr.mxu0 0.0
    %436 = vmatpush1.msra.mxu0 0.0
    %437 = vmatprep.subr.mxu0 0.0
    %438 = vmatpush1.msra.mxu0 0.0
    %439 = vmatprep.subr.mxu0 0.0
    %440 = vmatpush1.msra.mxu0 0.0
    %441 = vmatprep.subr.mxu0 0.0
    %442 = vmatpush1.msra.mxu0 0.0
    %443 = vmatprep.subr.mxu0 0.0
    %444 = vmatpush1.msra.mxu0 0.0
    %445 = vmatprep.subr.mxu0 0.0
    %446 = vmatpush1.msra.mxu0 0.0
    %447 = vmatprep.subr.mxu0 0.0
    %448 = vmatpush1.msra.mxu0 0.0
    %449 = vmatprep.subr.mxu0 0.0
    %450 = vmatpush1.msra.mxu0 0.0
    %451 = vmatprep.subr.mxu0 0.0
    %452 = vmatpush1.msra.mxu0 0.0
    %453 = vmatprep.mubr.f32.mxu0 0.0
    %454 = vmatmul.mubr.f32.gmra.mrb[0].mxu0 %v290
    %v455 = vpop.f32.mrb[0].mxu0
    %v456 = vadd.f32 0.0, %v455
    %v457 = vpop.f32.mrb[0].mxu0
    %458 = vdwg.mxu0
    %v459 = vadd.f32 %v388, %v456
    %v460 = vxor.u32 %v459, 2147483648
    %v461 = vmul.f32 %v460, 1.442695
    %v462 = vpow.pop %v461
    %v463 = vadd.f32 %v462, 1.0
    %v464 = vrcp.pop %v463
    %v465 = vmul.f32 1.0, %v464
    %v466 = vtanh.pop %v459
    %v467 = vmul.f32 %v465, 0.0
    %469 = vrot.lane.b32.xlu0 %v466, 64
    %v470 = vpop.permute.xlu0 %469
    %v472 = vmul.f32 %v465, %v470
    %474 = vrot.lane.b32.xlu0 %v472, 32
    %v475 = vpop.permute.xlu0 %474
    %v477 = vadd.f32 %v467, %v475
    %v478 = vtanh.pop %v477
    %480 = vrot.lane.b32.xlu0 %v478, 64
    %v481 = vpop.permute.xlu0 %480
    %v483 = vmul.f32 %v465, %v481
    %485 = vrot.lane.b32.xlu0 %v386, 32
    %v486 = vpop.permute.xlu0 %485
    %vm488 = vcmask 254976
    %489 = vst.msk [vmem:[#allocation4] sm:$0x3] %vm488, %v486
    %491 = vrot.lane.b32.xlu0 %v483, 32
    %v492 = vpop.permute.xlu0 %491
    %s494 = scalar_lea.vmem [#allocation5], 14
    %495 = vst.msk [vmem:[%s494] sm:$0x3] %vm488, %v492
    %s496 = scalar_lea.vmem [#allocation2], 2
    %v497 = vld [vmem:[%s496] sm:$0x3]
    %v498 = vsel %vm108, %v486, 0
    %500 = vmatprep.subr.mxu0 0.0
    %501 = vmatpush1.msra.mxu0 %v280
    %502 = vmatprep.subr.mxu0 0.0
    %503 = vmatpush1.msra.mxu0 %v281
    %504 = vmatprep.subr.mxu0 0.0
    %505 = vmatpush1.msra.mxu0 %v282
    %506 = vmatprep.subr.mxu0 0.0
    %507 = vmatpush1.msra.mxu0 %v283
    %508 = vmatprep.subr.mxu0 0.0
    %509 = vmatpush1.msra.mxu0 0.0
    %510 = vmatprep.subr.mxu0 0.0
    %511 = vmatpush1.msra.mxu0 0.0
    %512 = vmatprep.subr.mxu0 0.0
    %513 = vmatpush1.msra.mxu0 0.0
    %514 = vmatprep.subr.mxu0 0.0
    %515 = vmatpush1.msra.mxu0 0.0
    %516 = vmatprep.subr.mxu0 0.0
    %517 = vmatpush1.msra.mxu0 0.0
    %518 = vmatprep.subr.mxu0 0.0
    %519 = vmatpush1.msra.mxu0 0.0
    %520 = vmatprep.subr.mxu0 0.0
    %521 = vmatpush1.msra.mxu0 0.0
    %522 = vmatprep.subr.mxu0 0.0
    %523 = vmatpush1.msra.mxu0 0.0
    %524 = vmatprep.subr.mxu0 0.0
    %525 = vmatpush1.msra.mxu0 0.0
    %526 = vmatprep.subr.mxu0 0.0
    %527 = vmatpush1.msra.mxu0 0.0
    %528 = vmatprep.subr.mxu0 0.0
    %529 = vmatpush1.msra.mxu0 0.0
    %530 = vmatprep.subr.mxu0 0.0
    %531 = vmatpush1.msra.mxu0 0.0
    %532 = vmatprep.subr.mxu0 0.0
    %533 = vmatpush1.msra.mxu0 0.0
    %534 = vmatprep.subr.mxu0 0.0
    %535 = vmatpush1.msra.mxu0 0.0
    %536 = vmatprep.subr.mxu0 0.0
    %537 = vmatpush1.msra.mxu0 0.0
    %538 = vmatprep.subr.mxu0 0.0
    %539 = vmatpush1.msra.mxu0 0.0
    %540 = vmatprep.subr.mxu0 0.0
    %541 = vmatpush1.msra.mxu0 0.0
    %542 = vmatprep.subr.mxu0 0.0
    %543 = vmatpush1.msra.mxu0 0.0
    %544 = vmatprep.subr.mxu0 0.0
    %545 = vmatpush1.msra.mxu0 0.0
    %546 = vmatprep.subr.mxu0 0.0
    %547 = vmatpush1.msra.mxu0 0.0
    %548 = vmatprep.subr.mxu0 0.0
    %549 = vmatpush1.msra.mxu0 0.0
    %550 = vmatprep.subr.mxu0 0.0
    %551 = vmatpush1.msra.mxu0 0.0
    %552 = vmatprep.subr.mxu0 0.0
    %553 = vmatpush1.msra.mxu0 0.0
    %554 = vmatprep.subr.mxu0 0.0
    %555 = vmatpush1.msra.mxu0 0.0
    %556 = vmatprep.subr.mxu0 0.0
    %557 = vmatpush1.msra.mxu0 0.0
    %558 = vmatprep.subr.mxu0 0.0
    %559 = vmatpush1.msra.mxu0 0.0
    %560 = vmatprep.subr.mxu0 0.0
    %561 = vmatpush1.msra.mxu0 0.0
    %562 = vmatprep.subr.mxu0 0.0
    %563 = vmatpush1.msra.mxu0 0.0
    %564 = vmatprep.mubr.f32.mxu0 0.0
    %565 = vmatmul.mubr.f32.gmra.mrb[0].mxu0 %v498
    %v566 = vpop.f32.mrb[0].mxu0
    %v567 = vadd.f32 0.0, %v566
    %v568 = vpop.f32.mrb[0].mxu0
    %569 = vdwg.mxu0
    %v570 = vadd.f32 %v497, %v567
    %v571 = vxor.u32 %v570, 2147483648
    %v572 = vmul.f32 %v571, 1.442695
    %v573 = vpow.pop %v572
    %v574 = vadd.f32 %v573, 1.0
    %v575 = vrcp.pop %v574
    %v576 = vmul.f32 1.0, %v575
    %v577 = vtanh.pop %v570
    %v578 = vmul.f32 %v576, %v380
    %580 = vrot.lane.b32.xlu0 %v577, 64
    %v581 = vpop.permute.xlu0 %580
    %v583 = vmul.f32 %v576, %v581
    %585 = vrot.lane.b32.xlu0 %v583, 32
    %v586 = vpop.permute.xlu0 %585
    %v588 = vadd.f32 %v578, %v586
    %v589 = vtanh.pop %v588
    %591 = vrot.lane.b32.xlu0 %v589, 64
    %v592 = vpop.permute.xlu0 %591
    %v594 = vmul.f32 %v576, %v592
    %s595 = scalar_lea.vmem [#allocation3], 12
    %v596 = vld [vmem:[%s595] sm:$0x3]
    %v597 = vsel %vm108, %v492, 0
    %599 = vmatprep.subr.mxu0 0.0
    %600 = vmatpush1.msra.mxu0 %v284
    %601 = vmatprep.subr.mxu0 0.0
    %602 = vmatpush1.msra.mxu0 %v285
    %603 = vmatprep.subr.mxu0 0.0
    %604 = vmatpush1.msra.mxu0 %v286
    %605 = vmatprep.subr.mxu0 0.0
    %606 = vmatpush1.msra.mxu0 %v287
    %607 = vmatprep.subr.mxu0 0.0
    %608 = vmatpush1.msra.mxu0 0.0
    %609 = vmatprep.subr.mxu0 0.0
    %610 = vmatpush1.msra.mxu0 0.0
    %611 = vmatprep.subr.mxu0 0.0
    %612 = vmatpush1.msra.mxu0 0.0
    %613 = vmatprep.subr.mxu0 0.0
    %614 = vmatpush1.msra.mxu0 0.0
    %615 = vmatprep.subr.mxu0 0.0
    %616 = vmatpush1.msra.mxu0 0.0
    %617 = vmatprep.subr.mxu0 0.0
    %618 = vmatpush1.msra.mxu0 0.0
    %619 = vmatprep.subr.mxu0 0.0
    %620 = vmatpush1.msra.mxu0 0.0
    %621 = vmatprep.subr.mxu0 0.0
    %622 = vmatpush1.msra.mxu0 0.0
    %623 = vmatprep.subr.mxu0 0.0
    %624 = vmatpush1.msra.mxu0 0.0
    %625 = vmatprep.subr.mxu0 0.0
    %626 = vmatpush1.msra.mxu0 0.0
    %627 = vmatprep.subr.mxu0 0.0
    %628 = vmatpush1.msra.mxu0 0.0
    %629 = vmatprep.subr.mxu0 0.0
    %630 = vmatpush1.msra.mxu0 0.0
    %631 = vmatprep.subr.mxu0 0.0
    %632 = vmatpush1.msra.mxu0 0.0
    %633 = vmatprep.subr.mxu0 0.0
    %634 = vmatpush1.msra.mxu0 0.0
    %635 = vmatprep.subr.mxu0 0.0
    %636 = vmatpush1.msra.mxu0 0.0
    %637 = vmatprep.subr.mxu0 0.0
    %638 = vmatpush1.msra.mxu0 0.0
    %639 = vmatprep.subr.mxu0 0.0
    %640 = vmatpush1.msra.mxu0 0.0
    %641 = vmatprep.subr.mxu0 0.0
    %642 = vmatpush1.msra.mxu0 0.0
    %643 = vmatprep.subr.mxu0 0.0
    %644 = vmatpush1.msra.mxu0 0.0
    %645 = vmatprep.subr.mxu0 0.0
    %646 = vmatpush1.msra.mxu0 0.0
    %647 = vmatprep.subr.mxu0 0.0
    %648 = vmatpush1.msra.mxu0 0.0
    %649 = vmatprep.subr.mxu0 0.0
    %650 = vmatpush1.msra.mxu0 0.0
    %651 = vmatprep.subr.mxu0 0.0
    %652 = vmatpush1.msra.mxu0 0.0
    %653 = vmatprep.subr.mxu0 0.0
    %654 = vmatpush1.msra.mxu0 0.0
    %655 = vmatprep.subr.mxu0 0.0
    %656 = vmatpush1.msra.mxu0 0.0
    %657 = vmatprep.subr.mxu0 0.0
    %658 = vmatpush1.msra.mxu0 0.0
    %659 = vmatprep.subr.mxu0 0.0
    %660 = vmatpush1.msra.mxu0 0.0
    %661 = vmatprep.subr.mxu0 0.0
    %662 = vmatpush1.msra.mxu0 0.0
    %663 = vmatprep.mubr.f32.mxu0 0.0
    %664 = vmatmul.mubr.f32.gmra.mrb[0].mxu0 %v597
    %v665 = vpop.f32.mrb[0].mxu0
    %v666 = vadd.f32 0.0, %v665
    %v667 = vpop.f32.mrb[0].mxu0
    %668 = vdwg.mxu0
    %v669 = vadd.f32 %v596, %v666
    %v670 = vxor.u32 %v669, 2147483648
    %v671 = vmul.f32 %v670, 1.442695
    %v672 = vpow.pop %v671
    %v673 = vadd.f32 %v672, 1.0
    %v674 = vrcp.pop %v673
    %v675 = vmul.f32 1.0, %v674
    %v676 = vtanh.pop %v669
    %v677 = vmul.f32 %v675, %v477
    %679 = vrot.lane.b32.xlu0 %v676, 64
    %v680 = vpop.permute.xlu0 %679
    %v682 = vmul.f32 %v675, %v680
    %684 = vrot.lane.b32.xlu0 %v682, 32
    %v685 = vpop.permute.xlu0 %684
    %v687 = vadd.f32 %v677, %v685
    %v688 = vtanh.pop %v687
    %690 = vrot.lane.b32.xlu0 %v688, 64
    %v691 = vpop.permute.xlu0 %690
    %v693 = vmul.f32 %v675, %v691
    %695 = vrot.lane.b32.xlu0 %v594, 32
    %v696 = vpop.permute.xlu0 %695
    %s698 = scalar_lea.vmem [#allocation4], 2
    %699 = vst.msk [vmem:[%s698] sm:$0x3] %vm488, %v696
    %701 = vrot.lane.b32.xlu0 %v693, 32
    %v702 = vpop.permute.xlu0 %701
    %s704 = scalar_lea.vmem [#allocation5], 12
    %705 = vst.msk [vmem:[%s704] sm:$0x3] %vm488, %v702
    %s706 = scalar_lea.vmem [#allocation2], 4
    %v707 = vld [vmem:[%s706] sm:$0x3]
    %v708 = vsel %vm108, %v696, 0
    %710 = vmatprep.subr.mxu0 0.0
    %711 = vmatpush1.msra.mxu0 %v280
    %712 = vmatprep.subr.mxu0 0.0
    %713 = vmatpush1.msra.mxu0 %v281
    %714 = vmatprep.subr.mxu0 0.0
    %715 = vmatpush1.msra.mxu0 %v282
    %716 = vmatprep.subr.mxu0 0.0
    %717 = vmatpush1.msra.mxu0 %v283
    %718 = vmatprep.subr.mxu0 0.0
    %719 = vmatpush1.msra.mxu0 0.0
    %720 = vmatprep.subr.mxu0 0.0
    %721 = vmatpush1.msra.mxu0 0.0
    %722 = vmatprep.subr.mxu0 0.0
    %723 = vmatpush1.msra.mxu0 0.0
    %724 = vmatprep.subr.mxu0 0.0
    %725 = vmatpush1.msra.mxu0 0.0
    %726 = vmatprep.subr.mxu0 0.0
    %727 = vmatpush1.msra.mxu0 0.0
    %728 = vmatprep.subr.mxu0 0.0
    %729 = vmatpush1.msra.mxu0 0.0
    %730 = vmatprep.subr.mxu0 0.0
    %731 = vmatpush1.msra.mxu0 0.0
    %732 = vmatprep.subr.mxu0 0.0
    %733 = vmatpush1.msra.mxu0 0.0
    %734 = vmatprep.subr.mxu0 0.0
    %735 = vmatpush1.msra.mxu0 0.0
    %736 = vmatprep.subr.mxu0 0.0
    %737 = vmatpush1.msra.mxu0 0.0
    %738 = vmatprep.subr.mxu0 0.0
    %739 = vmatpush1.msra.mxu0 0.0
    %740 = vmatprep.subr.mxu0 0.0
    %741 = vmatpush1.msra.mxu0 0.0
    %742 = vmatprep.subr.mxu0 0.0
    %743 = vmatpush1.msra.mxu0 0.0
    %744 = vmatprep.subr.mxu0 0.0
    %745 = vmatpush1.msra.mxu0 0.0
    %746 = vmatprep.subr.mxu0 0.0
    %747 = vmatpush1.msra.mxu0 0.0
    %748 = vmatprep.subr.mxu0 0.0
    %749 = vmatpush1.msra.mxu0 0.0
    %750 = vmatprep.subr.mxu0 0.0
    %751 = vmatpush1.msra.mxu0 0.0
    %752 = vmatprep.subr.mxu0 0.0
    %753 = vmatpush1.msra.mxu0 0.0
    %754 = vmatprep.subr.mxu0 0.0
    %755 = vmatpush1.msra.mxu0 0.0
    %756 = vmatprep.subr.mxu0 0.0
    %757 = vmatpush1.msra.mxu0 0.0
    %758 = vmatprep.subr.mxu0 0.0
    %759 = vmatpush1.msra.mxu0 0.0
    %760 = vmatprep.subr.mxu0 0.0
    %761 = vmatpush1.msra.mxu0 0.0
    %762 = vmatprep.subr.mxu0 0.0
    %763 = vmatpush1.msra.mxu0 0.0
    %764 = vmatprep.subr.mxu0 0.0
    %765 = vmatpush1.msra.mxu0 0.0
    %766 = vmatprep.subr.mxu0 0.0
    %767 = vmatpush1.msra.mxu0 0.0
    %768 = vmatprep.subr.mxu0 0.0
    %769 = vmatpush1.msra.mxu0 0.0
    %770 = vmatprep.subr.mxu0 0.0
    %771 = vmatpush1.msra.mxu0 0.0
    %772 = vmatprep.subr.mxu0 0.0
    %773 = vmatpush1.msra.mxu0 0.0
    %774 = vmatprep.mubr.f32.mxu0 0.0
    %775 = vmatmul.mubr.f32.gmra.mrb[0].mxu0 %v708
    %v776 = vpop.f32.mrb[0].mxu0
    %v777 = vadd.f32 0.0, %v776
    %v778 = vpop.f32.mrb[0].mxu0
    %779 = vdwg.mxu0
    %v780 = vadd.f32 %v707, %v777
    %v781 = vxor.u32 %v780, 2147483648
    %v782 = vmul.f32 %v781, 1.442695
    %v783 = vpow.pop %v782
    %v784 = vadd.f32 %v783, 1.0
    %v785 = vrcp.pop %v784
    %v786 = vmul.f32 1.0, %v785
    %v787 = vtanh.pop %v780
    %v788 = vmul.f32 %v786, %v588
    %790 = vrot.lane.b32.xlu0 %v787, 64
    %v791 = vpop.permute.xlu0 %790
    %v793 = vmul.f32 %v786, %v791
    %795 = vrot.lane.b32.xlu0 %v793, 32
    %v796 = vpop.permute.xlu0 %795
    %v798 = vadd.f32 %v788, %v796
    %v799 = vtanh.pop %v798
    %801 = vrot.lane.b32.xlu0 %v799, 64
    %v802 = vpop.permute.xlu0 %801
    %v804 = vmul.f32 %v786, %v802
    %s805 = scalar_lea.vmem [#allocation3], 10
    %v806 = vld [vmem:[%s805] sm:$0x3]
    %v807 = vsel %vm108, %v702, 0
    %809 = vmatprep.subr.mxu0 0.0
    %810 = vmatpush1.msra.mxu0 %v284
    %811 = vmatprep.subr.mxu0 0.0
    %812 = vmatpush1.msra.mxu0 %v285
    %813 = vmatprep.subr.mxu0 0.0
    %814 = vmatpush1.msra.mxu0 %v286
    %815 = vmatprep.subr.mxu0 0.0
    %816 = vmatpush1.msra.mxu0 %v287
    %817 = vmatprep.subr.mxu0 0.0
    %818 = vmatpush1.msra.mxu0 0.0
    %819 = vmatprep.subr.mxu0 0.0
    %820 = vmatpush1.msra.mxu0 0.0
    %821 = vmatprep.subr.mxu0 0.0
    %822 = vmatpush1.msra.mxu0 0.0
    %823 = vmatprep.subr.mxu0 0.0
    %824 = vmatpush1.msra.mxu0 0.0
    %825 = vmatprep.subr.mxu0 0.0
    %826 = vmatpush1.msra.mxu0 0.0
    %827 = vmatprep.subr.mxu0 0.0
    %828 = vmatpush1.msra.mxu0 0.0
    %829 = vmatprep.subr.mxu0 0.0
    %830 = vmatpush1.msra.mxu0 0.0
    %831 = vmatprep.subr.mxu0 0.0
    %832 = vmatpush1.msra.mxu0 0.0
    %833 = vmatprep.subr.mxu0 0.0
    %834 = vmatpush1.msra.mxu0 0.0
    %835 = vmatprep.subr.mxu0 0.0
    %836 = vmatpush1.msra.mxu0 0.0
    %837 = vmatprep.subr.mxu0 0.0
    %838 = vmatpush1.msra.mxu0 0.0
    %839 = vmatprep.subr.mxu0 0.0
    %840 = vmatpush1.msra.mxu0 0.0
    %841 = vmatprep.subr.mxu0 0.0
    %842 = vmatpush1.msra.mxu0 0.0
    %843 = vmatprep.subr.mxu0 0.0
    %844 = vmatpush1.msra.mxu0 0.0
    %845 = vmatprep.subr.mxu0 0.0
    %846 = vmatpush1.msra.mxu0 0.0
    %847 = vmatprep.subr.mxu0 0.0
    %848 = vmatpush1.msra.mxu0 0.0
    %849 = vmatprep.subr.mxu0 0.0
    %850 = vmatpush1.msra.mxu0 0.0
    %851 = vmatprep.subr.mxu0 0.0
    %852 = vmatpush1.msra.mxu0 0.0
    %853 = vmatprep.subr.mxu0 0.0
    %854 = vmatpush1.msra.mxu0 0.0
    %855 = vmatprep.subr.mxu0 0.0
    %856 = vmatpush1.msra.mxu0 0.0
    %857 = vmatprep.subr.mxu0 0.0
    %858 = vmatpush1.msra.mxu0 0.0
    %859 = vmatprep.subr.mxu0 0.0
    %860 = vmatpush1.msra.mxu0 0.0
    %861 = vmatprep.subr.mxu0 0.0
    %862 = vmatpush1.msra.mxu0 0.0
    %863 = vmatprep.subr.mxu0 0.0
    %864 = vmatpush1.msra.mxu0 0.0
    %865 = vmatprep.subr.mxu0 0.0
    %866 = vmatpush1.msra.mxu0 0.0
    %867 = vmatprep.subr.mxu0 0.0
    %868 = vmatpush1.msra.mxu0 0.0
    %869 = vmatprep.subr.mxu0 0.0
    %870 = vmatpush1.msra.mxu0 0.0
    %871 = vmatprep.subr.mxu0 0.0
    %872 = vmatpush1.msra.mxu0 0.0
    %873 = vmatprep.mubr.f32.mxu0 0.0
    %874 = vmatmul.mubr.f32.gmra.mrb[0].mxu0 %v807
    %v875 = vpop.f32.mrb[0].mxu0
    %v876 = vadd.f32 0.0, %v875
    %v877 = vpop.f32.mrb[0].mxu0
    %878 = vdwg.mxu0
    %v879 = vadd.f32 %v806, %v876
    %v880 = vxor.u32 %v879, 2147483648
    %v881 = vmul.f32 %v880, 1.442695
    %v882 = vpow.pop %v881
    %v883 = vadd.f32 %v882, 1.0
    %v884 = vrcp.pop %v883
    %v885 = vmul.f32 1.0, %v884
    %v886 = vtanh.pop %v879
    %v887 = vmul.f32 %v885, %v687
    %889 = vrot.lane.b32.xlu0 %v886, 64
    %v890 = vpop.permute.xlu0 %889
    %v892 = vmul.f32 %v885, %v890
    %894 = vrot.lane.b32.xlu0 %v892, 32
    %v895 = vpop.permute.xlu0 %894
    %v897 = vadd.f32 %v887, %v895
    %v898 = vtanh.pop %v897
    %900 = vrot.lane.b32.xlu0 %v898, 64
    %v901 = vpop.permute.xlu0 %900
    %v903 = vmul.f32 %v885, %v901
    %905 = vrot.lane.b32.xlu0 %v804, 32
    %v906 = vpop.permute.xlu0 %905
    %s908 = scalar_lea.vmem [#allocation4], 4
    %909 = vst.msk [vmem:[%s908] sm:$0x3] %vm488, %v906
    %911 = vrot.lane.b32.xlu0 %v903, 32
    %v912 = vpop.permute.xlu0 %911
    %s914 = scalar_lea.vmem [#allocation5], 10
    %915 = vst.msk [vmem:[%s914] sm:$0x3] %vm488, %v912
    %s916 = scalar_lea.vmem [#allocation2], 6
    %v917 = vld [vmem:[%s916] sm:$0x3]
    %v918 = vsel %vm108, %v906, 0
    %920 = vmatprep.subr.mxu0 0.0
    %921 = vmatpush1.msra.mxu0 %v280
    %922 = vmatprep.subr.mxu0 0.0
    %923 = vmatpush1.msra.mxu0 %v281
    %924 = vmatprep.subr.mxu0 0.0
    %925 = vmatpush1.msra.mxu0 %v282
    %926 = vmatprep.subr.mxu0 0.0
    %927 = vmatpush1.msra.mxu0 %v283
    %928 = vmatprep.subr.mxu0 0.0
    %929 = vmatpush1.msra.mxu0 0.0
    %930 = vmatprep.subr.mxu0 0.0
    %931 = vmatpush1.msra.mxu0 0.0
    %932 = vmatprep.subr.mxu0 0.0
    %933 = vmatpush1.msra.mxu0 0.0
    %934 = vmatprep.subr.mxu0 0.0
    %935 = vmatpush1.msra.mxu0 0.0
    %936 = vmatprep.subr.mxu0 0.0
    %937 = vmatpush1.msra.mxu0 0.0
    %938 = vmatprep.subr.mxu0 0.0
    %939 = vmatpush1.msra.mxu0 0.0
    %940 = vmatprep.subr.mxu0 0.0
    %941 = vmatpush1.msra.mxu0 0.0
    %942 = vmatprep.subr.mxu0 0.0
    %943 = vmatpush1.msra.mxu0 0.0
    %944 = vmatprep.subr.mxu0 0.0
    %945 = vmatpush1.msra.mxu0 0.0
    %946 = vmatprep.subr.mxu0 0.0
    %947 = vmatpush1.msra.mxu0 0.0
    %948 = vmatprep.subr.mxu0 0.0
    %949 = vmatpush1.msra.mxu0 0.0
    %950 = vmatprep.subr.mxu0 0.0
    %951 = vmatpush1.msra.mxu0 0.0
    %952 = vmatprep.subr.mxu0 0.0
    %953 = vmatpush1.msra.mxu0 0.0
    %954 = vmatprep.subr.mxu0 0.0
    %955 = vmatpush1.msra.mxu0 0.0
    %956 = vmatprep.subr.mxu0 0.0
    %957 = vmatpush1.msra.mxu0 0.0
    %958 = vmatprep.subr.mxu0 0.0
    %959 = vmatpush1.msra.mxu0 0.0
    %960 = vmatprep.subr.mxu0 0.0
    %961 = vmatpush1.msra.mxu0 0.0
    %962 = vmatprep.subr.mxu0 0.0
    %963 = vmatpush1.msra.mxu0 0.0
    %964 = vmatprep.subr.mxu0 0.0
    %965 = vmatpush1.msra.mxu0 0.0
    %966 = vmatprep.subr.mxu0 0.0
    %967 = vmatpush1.msra.mxu0 0.0
    %968 = vmatprep.subr.mxu0 0.0
    %969 = vmatpush1.msra.mxu0 0.0
    %970 = vmatprep.subr.mxu0 0.0
    %971 = vmatpush1.msra.mxu0 0.0
    %972 = vmatprep.subr.mxu0 0.0
    %973 = vmatpush1.msra.mxu0 0.0
    %974 = vmatprep.subr.mxu0 0.0
    %975 = vmatpush1.msra.mxu0 0.0
    %976 = vmatprep.subr.mxu0 0.0
    %977 = vmatpush1.msra.mxu0 0.0
    %978 = vmatprep.subr.mxu0 0.0
    %979 = vmatpush1.msra.mxu0 0.0
    %980 = vmatprep.subr.mxu0 0.0
    %981 = vmatpush1.msra.mxu0 0.0
    %982 = vmatprep.subr.mxu0 0.0
    %983 = vmatpush1.msra.mxu0 0.0
    %984 = vmatprep.mubr.f32.mxu0 0.0
    %985 = vmatmul.mubr.f32.gmra.mrb[0].mxu0 %v918
    %v986 = vpop.f32.mrb[0].mxu0
    %v987 = vadd.f32 0.0, %v986
    %v988 = vpop.f32.mrb[0].mxu0
    %989 = vdwg.mxu0
    %v990 = vadd.f32 %v917, %v987
    %v991 = vxor.u32 %v990, 2147483648
    %v992 = vmul.f32 %v991, 1.442695
    %v993 = vpow.pop %v992
    %v994 = vadd.f32 %v993, 1.0
    %v995 = vrcp.pop %v994
    %v996 = vmul.f32 1.0, %v995
    %v997 = vtanh.pop %v990
    %v998 = vmul.f32 %v996, %v798
    %1000 = vrot.lane.b32.xlu0 %v997, 64
    %v1001 = vpop.permute.xlu0 %1000
    %v1003 = vmul.f32 %v996, %v1001
    %1005 = vrot.lane.b32.xlu0 %v1003, 32
    %v1006 = vpop.permute.xlu0 %1005
    %v1008 = vadd.f32 %v998, %v1006
    %v1009 = vtanh.pop %v1008
    %1011 = vrot.lane.b32.xlu0 %v1009, 64
    %v1012 = vpop.permute.xlu0 %1011
    %v1014 = vmul.f32 %v996, %v1012
    %s1015 = scalar_lea.vmem [#allocation3], 8
    %v1016 = vld [vmem:[%s1015] sm:$0x3]
    %v1017 = vsel %vm108, %v912, 0
    %1019 = vmatprep.subr.mxu0 0.0
    %1020 = vmatpush1.msra.mxu0 %v284
    %1021 = vmatprep.subr.mxu0 0.0
    %1022 = vmatpush1.msra.mxu0 %v285
    %1023 = vmatprep.subr.mxu0 0.0
    %1024 = vmatpush1.msra.mxu0 %v286
    %1025 = vmatprep.subr.mxu0 0.0
    %1026 = vmatpush1.msra.mxu0 %v287
    %1027 = vmatprep.subr.mxu0 0.0
    %1028 = vmatpush1.msra.mxu0 0.0
    %1029 = vmatprep.subr.mxu0 0.0
    %1030 = vmatpush1.msra.mxu0 0.0
    %1031 = vmatprep.subr.mxu0 0.0
    %1032 = vmatpush1.msra.mxu0 0.0
    %1033 = vmatprep.subr.mxu0 0.0
    %1034 = vmatpush1.msra.mxu0 0.0
    %1035 = vmatprep.subr.mxu0 0.0
    %1036 = vmatpush1.msra.mxu0 0.0
    %1037 = vmatprep.subr.mxu0 0.0
    %1038 = vmatpush1.msra.mxu0 0.0
    %1039 = vmatprep.subr.mxu0 0.0
    %1040 = vmatpush1.msra.mxu0 0.0
    %1041 = vmatprep.subr.mxu0 0.0
    %1042 = vmatpush1.msra.mxu0 0.0
    %1043 = vmatprep.subr.mxu0 0.0
    %1044 = vmatpush1.msra.mxu0 0.0
    %1045 = vmatprep.subr.mxu0 0.0
    %1046 = vmatpush1.msra.mxu0 0.0
    %1047 = vmatprep.subr.mxu0 0.0
    %1048 = vmatpush1.msra.mxu0 0.0
    %1049 = vmatprep.subr.mxu0 0.0
    %1050 = vmatpush1.msra.mxu0 0.0
    %1051 = vmatprep.subr.mxu0 0.0
    %1052 = vmatpush1.msra.mxu0 0.0
    %1053 = vmatprep.subr.mxu0 0.0
    %1054 = vmatpush1.msra.mxu0 0.0
    %1055 = vmatprep.subr.mxu0 0.0
    %1056 = vmatpush1.msra.mxu0 0.0
    %1057 = vmatprep.subr.mxu0 0.0
    %1058 = vmatpush1.msra.mxu0 0.0
    %1059 = vmatprep.subr.mxu0 0.0
    %1060 = vmatpush1.msra.mxu0 0.0
    %1061 = vmatprep.subr.mxu0 0.0
    %1062 = vmatpush1.msra.mxu0 0.0
    %1063 = vmatprep.subr.mxu0 0.0
    %1064 = vmatpush1.msra.mxu0 0.0
    %1065 = vmatprep.subr.mxu0 0.0
    %1066 = vmatpush1.msra.mxu0 0.0
    %1067 = vmatprep.subr.mxu0 0.0
    %1068 = vmatpush1.msra.mxu0 0.0
    %1069 = vmatprep.subr.mxu0 0.0
    %1070 = vmatpush1.msra.mxu0 0.0
    %1071 = vmatprep.subr.mxu0 0.0
    %1072 = vmatpush1.msra.mxu0 0.0
    %1073 = vmatprep.subr.mxu0 0.0
    %1074 = vmatpush1.msra.mxu0 0.0
    %1075 = vmatprep.subr.mxu0 0.0
    %1076 = vmatpush1.msra.mxu0 0.0
    %1077 = vmatprep.subr.mxu0 0.0
    %1078 = vmatpush1.msra.mxu0 0.0
    %1079 = vmatprep.subr.mxu0 0.0
    %1080 = vmatpush1.msra.mxu0 0.0
    %1081 = vmatprep.subr.mxu0 0.0
    %1082 = vmatpush1.msra.mxu0 0.0
    %1083 = vmatprep.mubr.f32.mxu0 0.0
    %1084 = vmatmul.mubr.f32.gmra.mrb[0].mxu0 %v1017
    %v1085 = vpop.f32.mrb[0].mxu0
    %v1086 = vadd.f32 0.0, %v1085
    %v1087 = vpop.f32.mrb[0].mxu0
    %1088 = vdwg.mxu0
    %v1089 = vadd.f32 %v1016, %v1086
    %v1090 = vxor.u32 %v1089, 2147483648
    %v1091 = vmul.f32 %v1090, 1.442695
    %v1092 = vpow.pop %v1091
    %v1093 = vadd.f32 %v1092, 1.0
    %v1094 = vrcp.pop %v1093
    %v1095 = vmul.f32 1.0, %v1094
    %v1096 = vtanh.pop %v1089
    %v1097 = vmul.f32 %v1095, %v897
    %1099 = vrot.lane.b32.xlu0 %v1096, 64
    %v1100 = vpop.permute.xlu0 %1099
    %v1102 = vmul.f32 %v1095, %v1100
    %1104 = vrot.lane.b32.xlu0 %v1102, 32
    %v1105 = vpop.permute.xlu0 %1104
    %v1107 = vadd.f32 %v1097, %v1105
    %v1108 = vtanh.pop %v1107
    %1110 = vrot.lane.b32.xlu0 %v1108, 64
    %v1111 = vpop.permute.xlu0 %1110
    %v1113 = vmul.f32 %v1095, %v1111
    %1115 = vrot.lane.b32.xlu0 %v1014, 32
    %v1116 = vpop.permute.xlu0 %1115
    %s1118 = scalar_lea.vmem [#allocation4], 6
    %1119 = vst.msk [vmem:[%s1118] sm:$0x3] %vm488, %v1116
    %1121 = vrot.lane.b32.xlu0 %v1113, 32
    %v1122 = vpop.permute.xlu0 %1121
    %s1124 = scalar_lea.vmem [#allocation5], 8
    %1125 = vst.msk [vmem:[%s1124] sm:$0x3] %vm488, %v1122
    %s1126 = scalar_lea.vmem [#allocation2], 8
    %v1127 = vld [vmem:[%s1126] sm:$0x3]
    %v1128 = vsel %vm108, %v1116, 0
    %1130 = vmatprep.subr.mxu0 0.0
    %1131 = vmatpush1.msra.mxu0 %v280
    %1132 = vmatprep.subr.mxu0 0.0
    %1133 = vmatpush1.msra.mxu0 %v281
    %1134 = vmatprep.subr.mxu0 0.0
    %1135 = vmatpush1.msra.mxu0 %v282
    %1136 = vmatprep.subr.mxu0 0.0
    %1137 = vmatpush1.msra.mxu0 %v283
    %1138 = vmatprep.subr.mxu0 0.0
    %1139 = vmatpush1.msra.mxu0 0.0
    %1140 = vmatprep.subr.mxu0 0.0
    %1141 = vmatpush1.msra.mxu0 0.0
    %1142 = vmatprep.subr.mxu0 0.0
    %1143 = vmatpush1.msra.mxu0 0.0
    %1144 = vmatprep.subr.mxu0 0.0
    %1145 = vmatpush1.msra.mxu0 0.0
    %1146 = vmatprep.subr.mxu0 0.0
    %1147 = vmatpush1.msra.mxu0 0.0
    %1148 = vmatprep.subr.mxu0 0.0
    %1149 = vmatpush1.msra.mxu0 0.0
    %1150 = vmatprep.subr.mxu0 0.0
    %1151 = vmatpush1.msra.mxu0 0.0
    %1152 = vmatprep.subr.mxu0 0.0
    %1153 = vmatpush1.msra.mxu0 0.0
    %1154 = vmatprep.subr.mxu0 0.0
    %1155 = vmatpush1.msra.mxu0 0.0
    %1156 = vmatprep.subr.mxu0 0.0
    %1157 = vmatpush1.msra.mxu0 0.0
    %1158 = vmatprep.subr.mxu0 0.0
    %1159 = vmatpush1.msra.mxu0 0.0
    %1160 = vmatprep.subr.mxu0 0.0
    %1161 = vmatpush1.msra.mxu0 0.0
    %1162 = vmatprep.subr.mxu0 0.0
    %1163 = vmatpush1.msra.mxu0 0.0
    %1164 = vmatprep.subr.mxu0 0.0
    %1165 = vmatpush1.msra.mxu0 0.0
    %1166 = vmatprep.subr.mxu0 0.0
    %1167 = vmatpush1.msra.mxu0 0.0
    %1168 = vmatprep.subr.mxu0 0.0
    %1169 = vmatpush1.msra.mxu0 0.0
    %1170 = vmatprep.subr.mxu0 0.0
    %1171 = vmatpush1.msra.mxu0 0.0
    %1172 = vmatprep.subr.mxu0 0.0
    %1173 = vmatpush1.msra.mxu0 0.0
    %1174 = vmatprep.subr.mxu0 0.0
    %1175 = vmatpush1.msra.mxu0 0.0
    %1176 = vmatprep.subr.mxu0 0.0
    %1177 = vmatpush1.msra.mxu0 0.0
    %1178 = vmatprep.subr.mxu0 0.0
    %1179 = vmatpush1.msra.mxu0 0.0
    %1180 = vmatprep.subr.mxu0 0.0
    %1181 = vmatpush1.msra.mxu0 0.0
    %1182 = vmatprep.subr.mxu0 0.0
    %1183 = vmatpush1.msra.mxu0 0.0
    %1184 = vmatprep.subr.mxu0 0.0
    %1185 = vmatpush1.msra.mxu0 0.0
    %1186 = vmatprep.subr.mxu0 0.0
    %1187 = vmatpush1.msra.mxu0 0.0
    %1188 = vmatprep.subr.mxu0 0.0
    %1189 = vmatpush1.msra.mxu0 0.0
    %1190 = vmatprep.subr.mxu0 0.0
    %1191 = vmatpush1.msra.mxu0 0.0
    %1192 = vmatprep.subr.mxu0 0.0
    %1193 = vmatpush1.msra.mxu0 0.0
    %1194 = vmatprep.mubr.f32.mxu0 0.0
    %1195 = vmatmul.mubr.f32.gmra.mrb[0].mxu0 %v1128
    %v1196 = vpop.f32.mrb[0].mxu0
    %v1197 = vadd.f32 0.0, %v1196
    %v1198 = vpop.f32.mrb[0].mxu0
    %1199 = vdwg.mxu0
    %v1200 = vadd.f32 %v1127, %v1197
    %v1201 = vxor.u32 %v1200, 2147483648
    %v1202 = vmul.f32 %v1201, 1.442695
    %v1203 = vpow.pop %v1202
    %v1204 = vadd.f32 %v1203, 1.0
    %v1205 = vrcp.pop %v1204
    %v1206 = vmul.f32 1.0, %v1205
    %v1207 = vtanh.pop %v1200
    %v1208 = vmul.f32 %v1206, %v1008
    %1210 = vrot.lane.b32.xlu0 %v1207, 64
    %v1211 = vpop.permute.xlu0 %1210
    %v1213 = vmul.f32 %v1206, %v1211
    %1215 = vrot.lane.b32.xlu0 %v1213, 32
    %v1216 = vpop.permute.xlu0 %1215
    %v1218 = vadd.f32 %v1208, %v1216
    %v1219 = vtanh.pop %v1218
    %1221 = vrot.lane.b32.xlu0 %v1219, 64
    %v1222 = vpop.permute.xlu0 %1221
    %v1224 = vmul.f32 %v1206, %v1222
    %s1225 = scalar_lea.vmem [#allocation3], 6
    %v1226 = vld [vmem:[%s1225] sm:$0x3]
    %v1227 = vsel %vm108, %v1122, 0
    %1229 = vmatprep.subr.mxu0 0.0
    %1230 = vmatpush1.msra.mxu0 %v284
    %1231 = vmatprep.subr.mxu0 0.0
    %1232 = vmatpush1.msra.mxu0 %v285
    %1233 = vmatprep.subr.mxu0 0.0
    %1234 = vmatpush1.msra.mxu0 %v286
    %1235 = vmatprep.subr.mxu0 0.0
    %1236 = vmatpush1.msra.mxu0 %v287
    %1237 = vmatprep.subr.mxu0 0.0
    %1238 = vmatpush1.msra.mxu0 0.0
    %1239 = vmatprep.subr.mxu0 0.0
    %1240 = vmatpush1.msra.mxu0 0.0
    %1241 = vmatprep.subr.mxu0 0.0
    %1242 = vmatpush1.msra.mxu0 0.0
    %1243 = vmatprep.subr.mxu0 0.0
    %1244 = vmatpush1.msra.mxu0 0.0
    %1245 = vmatprep.subr.mxu0 0.0
    %1246 = vmatpush1.msra.mxu0 0.0
    %1247 = vmatprep.subr.mxu0 0.0
    %1248 = vmatpush1.msra.mxu0 0.0
    %1249 = vmatprep.subr.mxu0 0.0
    %1250 = vmatpush1.msra.mxu0 0.0
    %1251 = vmatprep.subr.mxu0 0.0
    %1252 = vmatpush1.msra.mxu0 0.0
    %1253 = vmatprep.subr.mxu0 0.0
    %1254 = vmatpush1.msra.mxu0 0.0
    %1255 = vmatprep.subr.mxu0 0.0
    %1256 = vmatpush1.msra.mxu0 0.0
    %1257 = vmatprep.subr.mxu0 0.0
    %1258 = vmatpush1.msra.mxu0 0.0
    %1259 = vmatprep.subr.mxu0 0.0
    %1260 = vmatpush1.msra.mxu0 0.0
    %1261 = vmatprep.subr.mxu0 0.0
    %1262 = vmatpush1.msra.mxu0 0.0
    %1263 = vmatprep.subr.mxu0 0.0
    %1264 = vmatpush1.msra.mxu0 0.0
    %1265 = vmatprep.subr.mxu0 0.0
    %1266 = vmatpush1.msra.mxu0 0.0
    %1267 = vmatprep.subr.mxu0 0.0
    %1268 = vmatpush1.msra.mxu0 0.0
    %1269 = vmatprep.subr.mxu0 0.0
    %1270 = vmatpush1.msra.mxu0 0.0
    %1271 = vmatprep.subr.mxu0 0.0
    %1272 = vmatpush1.msra.mxu0 0.0
    %1273 = vmatprep.subr.mxu0 0.0
    %1274 = vmatpush1.msra.mxu0 0.0
    %1275 = vmatprep.subr.mxu0 0.0
    %1276 = vmatpush1.msra.mxu0 0.0
    %1277 = vmatprep.subr.mxu0 0.0
    %1278 = vmatpush1.msra.mxu0 0.0
    %1279 = vmatprep.subr.mxu0 0.0
    %1280 = vmatpush1.msra.mxu0 0.0
    %1281 = vmatprep.subr.mxu0 0.0
    %1282 = vmatpush1.msra.mxu0 0.0
    %1283 = vmatprep.subr.mxu0 0.0
    %1284 = vmatpush1.msra.mxu0 0.0
    %1285 = vmatprep.subr.mxu0 0.0
    %1286 = vmatpush1.msra.mxu0 0.0
    %1287 = vmatprep.subr.mxu0 0.0
    %1288 = vmatpush1.msra.mxu0 0.0
    %1289 = vmatprep.subr.mxu0 0.0
    %1290 = vmatpush1.msra.mxu0 0.0
    %1291 = vmatprep.subr.mxu0 0.0
    %1292 = vmatpush1.msra.mxu0 0.0
    %1293 = vmatprep.mubr.f32.mxu0 0.0
    %1294 = vmatmul.mubr.f32.gmra.mrb[0].mxu0 %v1227
    %v1295 = vpop.f32.mrb[0].mxu0
    %v1296 = vadd.f32 0.0, %v1295
    %v1297 = vpop.f32.mrb[0].mxu0
    %1298 = vdwg.mxu0
    %v1299 = vadd.f32 %v1226, %v1296
    %v1300 = vxor.u32 %v1299, 2147483648
    %v1301 = vmul.f32 %v1300, 1.442695
    %v1302 = vpow.pop %v1301
    %v1303 = vadd.f32 %v1302, 1.0
    %v1304 = vrcp.pop %v1303
    %v1305 = vmul.f32 1.0, %v1304
    %v1306 = vtanh.pop %v1299
    %v1307 = vmul.f32 %v1305, %v1107
    %1309 = vrot.lane.b32.xlu0 %v1306, 64
    %v1310 = vpop.permute.xlu0 %1309
    %v1312 = vmul.f32 %v1305, %v1310
    %1314 = vrot.lane.b32.xlu0 %v1312, 32
    %v1315 = vpop.permute.xlu0 %1314
    %v1317 = vadd.f32 %v1307, %v1315
    %v1318 = vtanh.pop %v1317
    %1320 = vrot.lane.b32.xlu0 %v1318, 64
    %v1321 = vpop.permute.xlu0 %1320
    %v1323 = vmul.f32 %v1305, %v1321
    %1325 = vrot.lane.b32.xlu0 %v1224, 32
    %v1326 = vpop.permute.xlu0 %1325
    %s1328 = scalar_lea.vmem [#allocation4], 8
    %1329 = vst.msk [vmem:[%s1328] sm:$0x3] %vm488, %v1326
    %1331 = vrot.lane.b32.xlu0 %v1323, 32
    %v1332 = vpop.permute.xlu0 %1331
    %s1334 = scalar_lea.vmem [#allocation5], 6
    %1335 = vst.msk [vmem:[%s1334] sm:$0x3] %vm488, %v1332
    %s1336 = scalar_lea.vmem [#allocation2], 10
    %v1337 = vld [vmem:[%s1336] sm:$0x3]
    %v1338 = vsel %vm108, %v1326, 0
    %1340 = vmatprep.subr.mxu0 0.0
    %1341 = vmatpush1.msra.mxu0 %v280
    %1342 = vmatprep.subr.mxu0 0.0
    %1343 = vmatpush1.msra.mxu0 %v281
    %1344 = vmatprep.subr.mxu0 0.0
    %1345 = vmatpush1.msra.mxu0 %v282
    %1346 = vmatprep.subr.mxu0 0.0
    %1347 = vmatpush1.msra.mxu0 %v283
    %1348 = vmatprep.subr.mxu0 0.0
    %1349 = vmatpush1.msra.mxu0 0.0
    %1350 = vmatprep.subr.mxu0 0.0
    %1351 = vmatpush1.msra.mxu0 0.0
    %1352 = vmatprep.subr.mxu0 0.0
    %1353 = vmatpush1.msra.mxu0 0.0
    %1354 = vmatprep.subr.mxu0 0.0
    %1355 = vmatpush1.msra.mxu0 0.0
    %1356 = vmatprep.subr.mxu0 0.0
    %1357 = vmatpush1.msra.mxu0 0.0
    %1358 = vmatprep.subr.mxu0 0.0
    %1359 = vmatpush1.msra.mxu0 0.0
    %1360 = vmatprep.subr.mxu0 0.0
    %1361 = vmatpush1.msra.mxu0 0.0
    %1362 = vmatprep.subr.mxu0 0.0
    %1363 = vmatpush1.msra.mxu0 0.0
    %1364 = vmatprep.subr.mxu0 0.0
    %1365 = vmatpush1.msra.mxu0 0.0
    %1366 = vmatprep.subr.mxu0 0.0
    %1367 = vmatpush1.msra.mxu0 0.0
    %1368 = vmatprep.subr.mxu0 0.0
    %1369 = vmatpush1.msra.mxu0 0.0
    %1370 = vmatprep.subr.mxu0 0.0
    %1371 = vmatpush1.msra.mxu0 0.0
    %1372 = vmatprep.subr.mxu0 0.0
    %1373 = vmatpush1.msra.mxu0 0.0
    %1374 = vmatprep.subr.mxu0 0.0
    %1375 = vmatpush1.msra.mxu0 0.0
    %1376 = vmatprep.subr.mxu0 0.0
    %1377 = vmatpush1.msra.mxu0 0.0
    %1378 = vmatprep.subr.mxu0 0.0
    %1379 = vmatpush1.msra.mxu0 0.0
    %1380 = vmatprep.subr.mxu0 0.0
    %1381 = vmatpush1.msra.mxu0 0.0
    %1382 = vmatprep.subr.mxu0 0.0
    %1383 = vmatpush1.msra.mxu0 0.0
    %1384 = vmatprep.subr.mxu0 0.0
    %1385 = vmatpush1.msra.mxu0 0.0
    %1386 = vmatprep.subr.mxu0 0.0
    %1387 = vmatpush1.msra.mxu0 0.0
    %1388 = vmatprep.subr.mxu0 0.0
    %1389 = vmatpush1.msra.mxu0 0.0
    %1390 = vmatprep.subr.mxu0 0.0
    %1391 = vmatpush1.msra.mxu0 0.0
    %1392 = vmatprep.subr.mxu0 0.0
    %1393 = vmatpush1.msra.mxu0 0.0
    %1394 = vmatprep.subr.mxu0 0.0
    %1395 = vmatpush1.msra.mxu0 0.0
    %1396 = vmatprep.subr.mxu0 0.0
    %1397 = vmatpush1.msra.mxu0 0.0
    %1398 = vmatprep.subr.mxu0 0.0
    %1399 = vmatpush1.msra.mxu0 0.0
    %1400 = vmatprep.subr.mxu0 0.0
    %1401 = vmatpush1.msra.mxu0 0.0
    %1402 = vmatprep.subr.mxu0 0.0
    %1403 = vmatpush1.msra.mxu0 0.0
    %1404 = vmatprep.mubr.f32.mxu0 0.0
    %1405 = vmatmul.mubr.f32.gmra.mrb[0].mxu0 %v1338
    %v1406 = vpop.f32.mrb[0].mxu0
    %v1407 = vadd.f32 0.0, %v1406
    %v1408 = vpop.f32.mrb[0].mxu0
    %1409 = vdwg.mxu0
    %v1410 = vadd.f32 %v1337, %v1407
    %v1411 = vxor.u32 %v1410, 2147483648
    %v1412 = vmul.f32 %v1411, 1.442695
    %v1413 = vpow.pop %v1412
    %v1414 = vadd.f32 %v1413, 1.0
    %v1415 = vrcp.pop %v1414
    %v1416 = vmul.f32 1.0, %v1415
    %v1417 = vtanh.pop %v1410
    %v1418 = vmul.f32 %v1416, %v1218
    %1420 = vrot.lane.b32.xlu0 %v1417, 64
    %v1421 = vpop.permute.xlu0 %1420
    %v1423 = vmul.f32 %v1416, %v1421
    %1425 = vrot.lane.b32.xlu0 %v1423, 32
    %v1426 = vpop.permute.xlu0 %1425
    %v1428 = vadd.f32 %v1418, %v1426
    %v1429 = vtanh.pop %v1428
    %1431 = vrot.lane.b32.xlu0 %v1429, 64
    %v1432 = vpop.permute.xlu0 %1431
    %v1434 = vmul.f32 %v1416, %v1432
    %s1435 = scalar_lea.vmem [#allocation3], 4
    %v1436 = vld [vmem:[%s1435] sm:$0x3]
    %v1437 = vsel %vm108, %v1332, 0
    %1439 = vmatprep.subr.mxu0 0.0
    %1440 = vmatpush1.msra.mxu0 %v284
    %1441 = vmatprep.subr.mxu0 0.0
    %1442 = vmatpush1.msra.mxu0 %v285
    %1443 = vmatprep.subr.mxu0 0.0
    %1444 = vmatpush1.msra.mxu0 %v286
    %1445 = vmatprep.subr.mxu0 0.0
    %1446 = vmatpush1.msra.mxu0 %v287
    %1447 = vmatprep.subr.mxu0 0.0
    %1448 = vmatpush1.msra.mxu0 0.0
    %1449 = vmatprep.subr.mxu0 0.0
    %1450 = vmatpush1.msra.mxu0 0.0
    %1451 = vmatprep.subr.mxu0 0.0
    %1452 = vmatpush1.msra.mxu0 0.0
    %1453 = vmatprep.subr.mxu0 0.0
    %1454 = vmatpush1.msra.mxu0 0.0
    %1455 = vmatprep.subr.mxu0 0.0
    %1456 = vmatpush1.msra.mxu0 0.0
    %1457 = vmatprep.subr.mxu0 0.0
    %1458 = vmatpush1.msra.mxu0 0.0
    %1459 = vmatprep.subr.mxu0 0.0
    %1460 = vmatpush1.msra.mxu0 0.0
    %1461 = vmatprep.subr.mxu0 0.0
    %1462 = vmatpush1.msra.mxu0 0.0
    %1463 = vmatprep.subr.mxu0 0.0
    %1464 = vmatpush1.msra.mxu0 0.0
    %1465 = vmatprep.subr.mxu0 0.0
    %1466 = vmatpush1.msra.mxu0 0.0
    %1467 = vmatprep.subr.mxu0 0.0
    %1468 = vmatpush1.msra.mxu0 0.0
    %1469 = vmatprep.subr.mxu0 0.0
    %1470 = vmatpush1.msra.mxu0 0.0
    %1471 = vmatprep.subr.mxu0 0.0
    %1472 = vmatpush1.msra.mxu0 0.0
    %1473 = vmatprep.subr.mxu0 0.0
    %1474 = vmatpush1.msra.mxu0 0.0
    %1475 = vmatprep.subr.mxu0 0.0
    %1476 = vmatpush1.msra.mxu0 0.0
    %1477 = vmatprep.subr.mxu0 0.0
    %1478 = vmatpush1.msra.mxu0 0.0
    %1479 = vmatprep.subr.mxu0 0.0
    %1480 = vmatpush1.msra.mxu0 0.0
    %1481 = vmatprep.subr.mxu0 0.0
    %1482 = vmatpush1.msra.mxu0 0.0
    %1483 = vmatprep.subr.mxu0 0.0
    %1484 = vmatpush1.msra.mxu0 0.0
    %1485 = vmatprep.subr.mxu0 0.0
    %1486 = vmatpush1.msra.mxu0 0.0
    %1487 = vmatprep.subr.mxu0 0.0
    %1488 = vmatpush1.msra.mxu0 0.0
    %1489 = vmatprep.subr.mxu0 0.0
    %1490 = vmatpush1.msra.mxu0 0.0
    %1491 = vmatprep.subr.mxu0 0.0
    %1492 = vmatpush1.msra.mxu0 0.0
    %1493 = vmatprep.subr.mxu0 0.0
    %1494 = vmatpush1.msra.mxu0 0.0
    %1495 = vmatprep.subr.mxu0 0.0
    %1496 = vmatpush1.msra.mxu0 0.0
    %1497 = vmatprep.subr.mxu0 0.0
    %1498 = vmatpush1.msra.mxu0 0.0
    %1499 = vmatprep.subr.mxu0 0.0
    %1500 = vmatpush1.msra.mxu0 0.0
    %1501 = vmatprep.subr.mxu0 0.0
    %1502 = vmatpush1.msra.mxu0 0.0
    %1503 = vmatprep.mubr.f32.mxu0 0.0
    %1504 = vmatmul.mubr.f32.gmra.mrb[0].mxu0 %v1437
    %v1505 = vpop.f32.mrb[0].mxu0
    %v1506 = vadd.f32 0.0, %v1505
    %v1507 = vpop.f32.mrb[0].mxu0
    %1508 = vdwg.mxu0
    %v1509 = vadd.f32 %v1436, %v1506
    %v1510 = vxor.u32 %v1509, 2147483648
    %v1511 = vmul.f32 %v1510, 1.442695
    %v1512 = vpow.pop %v1511
    %v1513 = vadd.f32 %v1512, 1.0
    %v1514 = vrcp.pop %v1513
    %v1515 = vmul.f32 1.0, %v1514
    %v1516 = vtanh.pop %v1509
    %v1517 = vmul.f32 %v1515, %v1317
    %1519 = vrot.lane.b32.xlu0 %v1516, 64
    %v1520 = vpop.permute.xlu0 %1519
    %v1522 = vmul.f32 %v1515, %v1520
    %1524 = vrot.lane.b32.xlu0 %v1522, 32
    %v1525 = vpop.permute.xlu0 %1524
    %v1527 = vadd.f32 %v1517, %v1525
    %v1528 = vtanh.pop %v1527
    %1530 = vrot.lane.b32.xlu0 %v1528, 64
    %v1531 = vpop.permute.xlu0 %1530
    %v1533 = vmul.f32 %v1515, %v1531
    %1535 = vrot.lane.b32.xlu0 %v1434, 32
    %v1536 = vpop.permute.xlu0 %1535
    %s1538 = scalar_lea.vmem [#allocation4], 10
    %1539 = vst.msk [vmem:[%s1538] sm:$0x3] %vm488, %v1536
    %1541 = vrot.lane.b32.xlu0 %v1533, 32
    %v1542 = vpop.permute.xlu0 %1541
    %s1544 = scalar_lea.vmem [#allocation5], 4
    %1545 = vst.msk [vmem:[%s1544] sm:$0x3] %vm488, %v1542
    %s1546 = scalar_lea.vmem [#allocation2], 12
    %v1547 = vld [vmem:[%s1546] sm:$0x3]
    %v1548 = vsel %vm108, %v1536, 0
    %1550 = vmatprep.subr.mxu0 0.0
    %1551 = vmatpush1.msra.mxu0 %v280
    %1552 = vmatprep.subr.mxu0 0.0
    %1553 = vmatpush1.msra.mxu0 %v281
    %1554 = vmatprep.subr.mxu0 0.0
    %1555 = vmatpush1.msra.mxu0 %v282
    %1556 = vmatprep.subr.mxu0 0.0
    %1557 = vmatpush1.msra.mxu0 %v283
    %1558 = vmatprep.subr.mxu0 0.0
    %1559 = vmatpush1.msra.mxu0 0.0
    %1560 = vmatprep.subr.mxu0 0.0
    %1561 = vmatpush1.msra.mxu0 0.0
    %1562 = vmatprep.subr.mxu0 0.0
    %1563 = vmatpush1.msra.mxu0 0.0
    %1564 = vmatprep.subr.mxu0 0.0
    %1565 = vmatpush1.msra.mxu0 0.0
    %1566 = vmatprep.subr.mxu0 0.0
    %1567 = vmatpush1.msra.mxu0 0.0
    %1568 = vmatprep.subr.mxu0 0.0
    %1569 = vmatpush1.msra.mxu0 0.0
    %1570 = vmatprep.subr.mxu0 0.0
    %1571 = vmatpush1.msra.mxu0 0.0
    %1572 = vmatprep.subr.mxu0 0.0
    %1573 = vmatpush1.msra.mxu0 0.0
    %1574 = vmatprep.subr.mxu0 0.0
    %1575 = vmatpush1.msra.mxu0 0.0
    %1576 = vmatprep.subr.mxu0 0.0
    %1577 = vmatpush1.msra.mxu0 0.0
    %1578 = vmatprep.subr.mxu0 0.0
    %1579 = vmatpush1.msra.mxu0 0.0
    %1580 = vmatprep.subr.mxu0 0.0
    %1581 = vmatpush1.msra.mxu0 0.0
    %1582 = vmatprep.subr.mxu0 0.0
    %1583 = vmatpush1.msra.mxu0 0.0
    %1584 = vmatprep.subr.mxu0 0.0
    %1585 = vmatpush1.msra.mxu0 0.0
    %1586 = vmatprep.subr.mxu0 0.0
    %1587 = vmatpush1.msra.mxu0 0.0
    %1588 = vmatprep.subr.mxu0 0.0
    %1589 = vmatpush1.msra.mxu0 0.0
    %1590 = vmatprep.subr.mxu0 0.0
    %1591 = vmatpush1.msra.mxu0 0.0
    %1592 = vmatprep.subr.mxu0 0.0
    %1593 = vmatpush1.msra.mxu0 0.0
    %1594 = vmatprep.subr.mxu0 0.0
    %1595 = vmatpush1.msra.mxu0 0.0
    %1596 = vmatprep.subr.mxu0 0.0
    %1597 = vmatpush1.msra.mxu0 0.0
    %1598 = vmatprep.subr.mxu0 0.0
    %1599 = vmatpush1.msra.mxu0 0.0
    %1600 = vmatprep.subr.mxu0 0.0
    %1601 = vmatpush1.msra.mxu0 0.0
    %1602 = vmatprep.subr.mxu0 0.0
    %1603 = vmatpush1.msra.mxu0 0.0
    %1604 = vmatprep.subr.mxu0 0.0
    %1605 = vmatpush1.msra.mxu0 0.0
    %1606 = vmatprep.subr.mxu0 0.0
    %1607 = vmatpush1.msra.mxu0 0.0
    %1608 = vmatprep.subr.mxu0 0.0
    %1609 = vmatpush1.msra.mxu0 0.0
    %1610 = vmatprep.subr.mxu0 0.0
    %1611 = vmatpush1.msra.mxu0 0.0
    %1612 = vmatprep.subr.mxu0 0.0
    %1613 = vmatpush1.msra.mxu0 0.0
    %1614 = vmatprep.mubr.f32.mxu0 0.0
    %1615 = vmatmul.mubr.f32.gmra.mrb[0].mxu0 %v1548
    %v1616 = vpop.f32.mrb[0].mxu0
    %v1617 = vadd.f32 0.0, %v1616
    %v1618 = vpop.f32.mrb[0].mxu0
    %1619 = vdwg.mxu0
    %v1620 = vadd.f32 %v1547, %v1617
    %v1621 = vxor.u32 %v1620, 2147483648
    %v1622 = vmul.f32 %v1621, 1.442695
    %v1623 = vpow.pop %v1622
    %v1624 = vadd.f32 %v1623, 1.0
    %v1625 = vrcp.pop %v1624
    %v1626 = vmul.f32 1.0, %v1625
    %v1627 = vtanh.pop %v1620
    %v1628 = vmul.f32 %v1626, %v1428
    %1630 = vrot.lane.b32.xlu0 %v1627, 64
    %v1631 = vpop.permute.xlu0 %1630
    %v1633 = vmul.f32 %v1626, %v1631
    %1635 = vrot.lane.b32.xlu0 %v1633, 32
    %v1636 = vpop.permute.xlu0 %1635
    %v1638 = vadd.f32 %v1628, %v1636
    %v1639 = vtanh.pop %v1638
    %1641 = vrot.lane.b32.xlu0 %v1639, 64
    %v1642 = vpop.permute.xlu0 %1641
    %v1644 = vmul.f32 %v1626, %v1642
    %s1645 = scalar_lea.vmem [#allocation3], 2
    %v1646 = vld [vmem:[%s1645] sm:$0x3]
    %v1647 = vsel %vm108, %v1542, 0
    %1649 = vmatprep.subr.mxu0 0.0
    %1650 = vmatpush1.msra.mxu0 %v284
    %1651 = vmatprep.subr.mxu0 0.0
    %1652 = vmatpush1.msra.mxu0 %v285
    %1653 = vmatprep.subr.mxu0 0.0
    %1654 = vmatpush1.msra.mxu0 %v286
    %1655 = vmatprep.subr.mxu0 0.0
    %1656 = vmatpush1.msra.mxu0 %v287
    %1657 = vmatprep.subr.mxu0 0.0
    %1658 = vmatpush1.msra.mxu0 0.0
    %1659 = vmatprep.subr.mxu0 0.0
    %1660 = vmatpush1.msra.mxu0 0.0
    %1661 = vmatprep.subr.mxu0 0.0
    %1662 = vmatpush1.msra.mxu0 0.0
    %1663 = vmatprep.subr.mxu0 0.0
    %1664 = vmatpush1.msra.mxu0 0.0
    %1665 = vmatprep.subr.mxu0 0.0
    %1666 = vmatpush1.msra.mxu0 0.0
    %1667 = vmatprep.subr.mxu0 0.0
    %1668 = vmatpush1.msra.mxu0 0.0
    %1669 = vmatprep.subr.mxu0 0.0
    %1670 = vmatpush1.msra.mxu0 0.0
    %1671 = vmatprep.subr.mxu0 0.0
    %1672 = vmatpush1.msra.mxu0 0.0
    %1673 = vmatprep.subr.mxu0 0.0
    %1674 = vmatpush1.msra.mxu0 0.0
    %1675 = vmatprep.subr.mxu0 0.0
    %1676 = vmatpush1.msra.mxu0 0.0
    %1677 = vmatprep.subr.mxu0 0.0
    %1678 = vmatpush1.msra.mxu0 0.0
    %1679 = vmatprep.subr.mxu0 0.0
    %1680 = vmatpush1.msra.mxu0 0.0
    %1681 = vmatprep.subr.mxu0 0.0
    %1682 = vmatpush1.msra.mxu0 0.0
    %1683 = vmatprep.subr.mxu0 0.0
    %1684 = vmatpush1.msra.mxu0 0.0
    %1685 = vmatprep.subr.mxu0 0.0
    %1686 = vmatpush1.msra.mxu0 0.0
    %1687 = vmatprep.subr.mxu0 0.0
    %1688 = vmatpush1.msra.mxu0 0.0
    %1689 = vmatprep.subr.mxu0 0.0
    %1690 = vmatpush1.msra.mxu0 0.0
    %1691 = vmatprep.subr.mxu0 0.0
    %1692 = vmatpush1.msra.mxu0 0.0
    %1693 = vmatprep.subr.mxu0 0.0
    %1694 = vmatpush1.msra.mxu0 0.0
    %1695 = vmatprep.subr.mxu0 0.0
    %1696 = vmatpush1.msra.mxu0 0.0
    %1697 = vmatprep.subr.mxu0 0.0
    %1698 = vmatpush1.msra.mxu0 0.0
    %1699 = vmatprep.subr.mxu0 0.0
    %1700 = vmatpush1.msra.mxu0 0.0
    %1701 = vmatprep.subr.mxu0 0.0
    %1702 = vmatpush1.msra.mxu0 0.0
    %1703 = vmatprep.subr.mxu0 0.0
    %1704 = vmatpush1.msra.mxu0 0.0
    %1705 = vmatprep.subr.mxu0 0.0
    %1706 = vmatpush1.msra.mxu0 0.0
    %1707 = vmatprep.subr.mxu0 0.0
    %1708 = vmatpush1.msra.mxu0 0.0
    %1709 = vmatprep.subr.mxu0 0.0
    %1710 = vmatpush1.msra.mxu0 0.0
    %1711 = vmatprep.subr.mxu0 0.0
    %1712 = vmatpush1.msra.mxu0 0.0
    %1713 = vmatprep.mubr.f32.mxu0 0.0
    %1714 = vmatmul.mubr.f32.gmra.mrb[0].mxu0 %v1647
    %v1715 = vpop.f32.mrb[0].mxu0
    %v1716 = vadd.f32 0.0, %v1715
    %v1717 = vpop.f32.mrb[0].mxu0
    %1718 = vdwg.mxu0
    %v1719 = vadd.f32 %v1646, %v1716
    %v1720 = vxor.u32 %v1719, 2147483648
    %v1721 = vmul.f32 %v1720, 1.442695
    %v1722 = vpow.pop %v1721
    %v1723 = vadd.f32 %v1722, 1.0
    %v1724 = vrcp.pop %v1723
    %v1725 = vmul.f32 1.0, %v1724
    %v1726 = vtanh.pop %v1719
    %v1727 = vmul.f32 %v1725, %v1527
    %1729 = vrot.lane.b32.xlu0 %v1726, 64
    %v1730 = vpop.permute.xlu0 %1729
    %v1732 = vmul.f32 %v1725, %v1730
    %1734 = vrot.lane.b32.xlu0 %v1732, 32
    %v1735 = vpop.permute.xlu0 %1734
    %v1737 = vadd.f32 %v1727, %v1735
    %v1738 = vtanh.pop %v1737
    %1740 = vrot.lane.b32.xlu0 %v1738, 64
    %v1741 = vpop.permute.xlu0 %1740
    %v1743 = vmul.f32 %v1725, %v1741
    %1745 = vrot.lane.b32.xlu0 %v1644, 32
    %v1746 = vpop.permute.xlu0 %1745
    %s1748 = scalar_lea.vmem [#allocation4], 12
    %1749 = vst.msk [vmem:[%s1748] sm:$0x3] %vm488, %v1746
    %1751 = vrot.lane.b32.xlu0 %v1743, 32
    %v1752 = vpop.permute.xlu0 %1751
    %s1754 = scalar_lea.vmem [#allocation5], 2
    %1755 = vst.msk [vmem:[%s1754] sm:$0x3] %vm488, %v1752
    %s1756 = scalar_lea.vmem [#allocation2], 14
    %v1757 = vld [vmem:[%s1756] sm:$0x3]
    %v1758 = vsel %vm108, %v1746, 0
    %1760 = vmatprep.subr.mxu0 0.0
    %1761 = vmatpush1.msra.mxu0 %v280
    %1762 = vmatprep.subr.mxu0 0.0
    %1763 = vmatpush1.msra.mxu0 %v281
    %1764 = vmatprep.subr.mxu0 0.0
    %1765 = vmatpush1.msra.mxu0 %v282
    %1766 = vmatprep.subr.mxu0 0.0
    %1767 = vmatpush1.msra.mxu0 %v283
    %1768 = vmatprep.subr.mxu0 0.0
    %1769 = vmatpush1.msra.mxu0 0.0
    %1770 = vmatprep.subr.mxu0 0.0
    %1771 = vmatpush1.msra.mxu0 0.0
    %1772 = vmatprep.subr.mxu0 0.0
    %1773 = vmatpush1.msra.mxu0 0.0
    %1774 = vmatprep.subr.mxu0 0.0
    %1775 = vmatpush1.msra.mxu0 0.0
    %1776 = vmatprep.subr.mxu0 0.0
    %1777 = vmatpush1.msra.mxu0 0.0
    %1778 = vmatprep.subr.mxu0 0.0
    %1779 = vmatpush1.msra.mxu0 0.0
    %1780 = vmatprep.subr.mxu0 0.0
    %1781 = vmatpush1.msra.mxu0 0.0
    %1782 = vmatprep.subr.mxu0 0.0
    %1783 = vmatpush1.msra.mxu0 0.0
    %1784 = vmatprep.subr.mxu0 0.0
    %1785 = vmatpush1.msra.mxu0 0.0
    %1786 = vmatprep.subr.mxu0 0.0
    %1787 = vmatpush1.msra.mxu0 0.0
    %1788 = vmatprep.subr.mxu0 0.0
    %1789 = vmatpush1.msra.mxu0 0.0
    %1790 = vmatprep.subr.mxu0 0.0
    %1791 = vmatpush1.msra.mxu0 0.0
    %1792 = vmatprep.subr.mxu0 0.0
    %1793 = vmatpush1.msra.mxu0 0.0
    %1794 = vmatprep.subr.mxu0 0.0
    %1795 = vmatpush1.msra.mxu0 0.0
    %1796 = vmatprep.subr.mxu0 0.0
    %1797 = vmatpush1.msra.mxu0 0.0
    %1798 = vmatprep.subr.mxu0 0.0
    %1799 = vmatpush1.msra.mxu0 0.0
    %1800 = vmatprep.subr.mxu0 0.0
    %1801 = vmatpush1.msra.mxu0 0.0
    %1802 = vmatprep.subr.mxu0 0.0
    %1803 = vmatpush1.msra.mxu0 0.0
    %1804 = vmatprep.subr.mxu0 0.0
    %1805 = vmatpush1.msra.mxu0 0.0
    %1806 = vmatprep.subr.mxu0 0.0
    %1807 = vmatpush1.msra.mxu0 0.0
    %1808 = vmatprep.subr.mxu0 0.0
    %1809 = vmatpush1.msra.mxu0 0.0
    %1810 = vmatprep.subr.mxu0 0.0
    %1811 = vmatpush1.msra.mxu0 0.0
    %1812 = vmatprep.subr.mxu0 0.0
    %1813 = vmatpush1.msra.mxu0 0.0
    %1814 = vmatprep.subr.mxu0 0.0
    %1815 = vmatpush1.msra.mxu0 0.0
    %1816 = vmatprep.subr.mxu0 0.0
    %1817 = vmatpush1.msra.mxu0 0.0
    %1818 = vmatprep.subr.mxu0 0.0
    %1819 = vmatpush1.msra.mxu0 0.0
    %1820 = vmatprep.subr.mxu0 0.0
    %1821 = vmatpush1.msra.mxu0 0.0
    %1822 = vmatprep.subr.mxu0 0.0
    %1823 = vmatpush1.msra.mxu0 0.0
    %1824 = vmatprep.mubr.f32.mxu0 0.0
    %1825 = vmatmul.mubr.f32.gmra.mrb[0].mxu0 %v1758
    %v1826 = vpop.f32.mrb[0].mxu0
    %v1827 = vadd.f32 0.0, %v1826
    %v1828 = vpop.f32.mrb[0].mxu0
    %1829 = vdwg.mxu0
    %v1830 = vadd.f32 %v1757, %v1827
    %v1831 = vxor.u32 %v1830, 2147483648
    %v1832 = vmul.f32 %v1831, 1.442695
    %v1833 = vpow.pop %v1832
    %v1834 = vadd.f32 %v1833, 1.0
    %v1835 = vrcp.pop %v1834
    %v1836 = vmul.f32 1.0, %v1835
    %v1837 = vtanh.pop %v1830
    %v1838 = vmul.f32 %v1836, %v1638
    %1840 = vrot.lane.b32.xlu0 %v1837, 64
    %v1841 = vpop.permute.xlu0 %1840
    %v1843 = vmul.f32 %v1836, %v1841
    %1845 = vrot.lane.b32.xlu0 %v1843, 32
    %v1846 = vpop.permute.xlu0 %1845
    %v1848 = vadd.f32 %v1838, %v1846
    %v1849 = vtanh.pop %v1848
    %1851 = vrot.lane.b32.xlu0 %v1849, 64
    %v1852 = vpop.permute.xlu0 %1851
    %v1854 = vmul.f32 %v1836, %v1852
    %v1855 = vld [vmem:[#allocation3] sm:$0x3]
    %v1856 = vsel %vm108, %v1752, 0
    %1858 = vmatprep.subr.mxu0 0.0
    %1859 = vmatpush1.msra.mxu0 %v284
    %1860 = vmatprep.subr.mxu0 0.0
    %1861 = vmatpush1.msra.mxu0 %v285
    %1862 = vmatprep.subr.mxu0 0.0
    %1863 = vmatpush1.msra.mxu0 %v286
    %1864 = vmatprep.subr.mxu0 0.0
    %1865 = vmatpush1.msra.mxu0 %v287
    %1866 = vmatprep.subr.mxu0 0.0
    %1867 = vmatpush1.msra.mxu0 0.0
    %1868 = vmatprep.subr.mxu0 0.0
    %1869 = vmatpush1.msra.mxu0 0.0
    %1870 = vmatprep.subr.mxu0 0.0
    %1871 = vmatpush1.msra.mxu0 0.0
    %1872 = vmatprep.subr.mxu0 0.0
    %1873 = vmatpush1.msra.mxu0 0.0
    %1874 = vmatprep.subr.mxu0 0.0
    %1875 = vmatpush1.msra.mxu0 0.0
    %1876 = vmatprep.subr.mxu0 0.0
    %1877 = vmatpush1.msra.mxu0 0.0
    %1878 = vmatprep.subr.mxu0 0.0
    %1879 = vmatpush1.msra.mxu0 0.0
    %1880 = vmatprep.subr.mxu0 0.0
    %1881 = vmatpush1.msra.mxu0 0.0
    %1882 = vmatprep.subr.mxu0 0.0
    %1883 = vmatpush1.msra.mxu0 0.0
    %1884 = vmatprep.subr.mxu0 0.0
    %1885 = vmatpush1.msra.mxu0 0.0
    %1886 = vmatprep.subr.mxu0 0.0
    %1887 = vmatpush1.msra.mxu0 0.0
    %1888 = vmatprep.subr.mxu0 0.0
    %1889 = vmatpush1.msra.mxu0 0.0
    %1890 = vmatprep.subr.mxu0 0.0
    %1891 = vmatpush1.msra.mxu0 0.0
    %1892 = vmatprep.subr.mxu0 0.0
    %1893 = vmatpush1.msra.mxu0 0.0
    %1894 = vmatprep.subr.mxu0 0.0
    %1895 = vmatpush1.msra.mxu0 0.0
    %1896 = vmatprep.subr.mxu0 0.0
    %1897 = vmatpush1.msra.mxu0 0.0
    %1898 = vmatprep.subr.mxu0 0.0
    %1899 = vmatpush1.msra.mxu0 0.0
    %1900 = vmatprep.subr.mxu0 0.0
    %1901 = vmatpush1.msra.mxu0 0.0
    %1902 = vmatprep.subr.mxu0 0.0
    %1903 = vmatpush1.msra.mxu0 0.0
    %1904 = vmatprep.subr.mxu0 0.0
    %1905 = vmatpush1.msra.mxu0 0.0
    %1906 = vmatprep.subr.mxu0 0.0
    %1907 = vmatpush1.msra.mxu0 0.0
    %1908 = vmatprep.subr.mxu0 0.0
    %1909 = vmatpush1.msra.mxu0 0.0
    %1910 = vmatprep.subr.mxu0 0.0
    %1911 = vmatpush1.msra.mxu0 0.0
    %1912 = vmatprep.subr.mxu0 0.0
    %1913 = vmatpush1.msra.mxu0 0.0
    %1914 = vmatprep.subr.mxu0 0.0
    %1915 = vmatpush1.msra.mxu0 0.0
    %1916 = vmatprep.subr.mxu0 0.0
    %1917 = vmatpush1.msra.mxu0 0.0
    %1918 = vmatprep.subr.mxu0 0.0
    %1919 = vmatpush1.msra.mxu0 0.0
    %1920 = vmatprep.subr.mxu0 0.0
    %1921 = vmatpush1.msra.mxu0 0.0
    %1922 = vmatprep.mubr.f32.mxu0 0.0
    %1923 = vmatmul.mubr.f32.gmra.mrb[0].mxu0 %v1856
    %v1924 = vpop.f32.mrb[0].mxu0
    %v1925 = vadd.f32 0.0, %v1924
    %v1926 = vpop.f32.mrb[0].mxu0
    %1927 = vdwg.mxu0
    %v1928 = vadd.f32 %v1855, %v1925
    %v1929 = vxor.u32 %v1928, 2147483648
    %v1930 = vmul.f32 %v1929, 1.442695
    %v1931 = vpow.pop %v1930
    %v1932 = vadd.f32 %v1931, 1.0
    %v1933 = vrcp.pop %v1932
    %v1934 = vmul.f32 1.0, %v1933
    %v1935 = vtanh.pop %v1928
    %v1936 = vmul.f32 %v1934, %v1737
    %1938 = vrot.lane.b32.xlu0 %v1935, 64
    %v1939 = vpop.permute.xlu0 %1938
    %v1941 = vmul.f32 %v1934, %v1939
    %1943 = vrot.lane.b32.xlu0 %v1941, 32
    %v1944 = vpop.permute.xlu0 %1943
    %v1946 = vadd.f32 %v1936, %v1944
    %v1947 = vtanh.pop %v1946
    %1949 = vrot.lane.b32.xlu0 %v1947, 64
    %v1950 = vpop.permute.xlu0 %1949
    %v1952 = vmul.f32 %v1934, %v1950
    %1954 = vrot.lane.b32.xlu0 %v1854, 32
    %v1955 = vpop.permute.xlu0 %1954
    %s1957 = scalar_lea.vmem [#allocation4], 14
    %1958 = vst.msk [vmem:[%s1957] sm:$0x3] %vm488, %v1955
    %1960 = vrot.lane.b32.xlu0 %v1952, 32
    %v1961 = vpop.permute.xlu0 %1960
    %1963 = vst.msk [vmem:[#allocation5] sm:$0x3] %vm488, %v1961
    %v1964 = vld [vmem:[#allocation4] sm:$0xff]
    %v1965 = vld [vmem:[#allocation4 + $0x8] sm:$0xff]
    %1966 = vst.msk [vmem:[#allocation15] sm:$0xff] %vm108, %v1964
    %1967 = vst.msk [vmem:[#allocation15 + $0x8] sm:$0xff] %vm108, %v1965
    %v1968 = vld [vmem:[#allocation5] sm:$0xff]
    %v1969 = vld [vmem:[#allocation5 + $0x8] sm:$0xff]
    %1972 = vrot.lane.b32.xlu0 %v1968, 32
    %v1973 = vpop.permute.xlu0 %1972
    %1974 = vrot.lane.b32.xlu0 %v1969, 32
    %v1975 = vpop.permute.xlu0 %1974
    %vm1978 = vcmask 523520
    %1979 = vst.msk [vmem:[#allocation15] sm:$0xff] %vm1978, %v1973
    %1980 = vst.msk [vmem:[#allocation15 + $0x8] sm:$0xff] %vm1978, %v1975
    // Predicated region
    $region50: #{tpu_custom_call.1} parent=1 // pred_check
      _
    $region51: #{tpu_custom_call.1} parent=1 // pred_check_branch
      %1982 = sbr.rel (0) target = $region53
    $region52: #{tpu_custom_call.1} parent=1 // pred_region
      %s1984 = ssub.s32 256, 256
      %1985 = vsyncadd [#allocation8], %s1984
      %s1986 = sshll.u32 [#allocation15], 4
      %s1987 = int_to_ptr.vmem [resolvable:$true] %s1986
      %1992 = dma.vmem_to_hbm [thread:$0]  %s1987, 256, %s7, [#allocation8], 128, 128, 8
    $region53: #{tpu_custom_call.1} parent=1 // pred_fallthru
      _
    // Predicated region
    $region54: #{tpu_custom_call.1} parent=1 // pred_check
      _
    $region55: #{tpu_custom_call.1} parent=1 // pred_check_branch
      %1994 = sbr.rel (0) target = $region57
    $region56: #{tpu_custom_call.1} parent=1 // pred_region
      %1995 = dma.done [#allocation8], 256
    $region57: #{tpu_custom_call.1} parent=1 // pred_fallthru
      _
    %1996 = vsyncpa [#allocation7], 1
    %1997 = vsyncpa [#allocation10], 1
    %1998 = vsyncpa [#allocation13], 1
    %1999 = vsyncpa [#allocation8], 1

</llo_original>
